<compile_context>
chip_gen: v5e
topology: v5e:2x2
jax: 0.10.0
libtpu: 0.0.40
codegen_flags: <defaults>
</compile_context>

<pallas_src>
import functools

import jax
import jax.numpy as jnp
from jax.experimental import pallas as pl
from jax.experimental.pallas import tpu as pltpu

# ----------------------- synthetic "CodeBERT-mini" config --------------------
VOCAB = 128
HIDDEN = 32
N_LAYERS = 2
N_HEADS = 4
HEAD_DIM = HIDDEN // N_HEADS
INTERMEDIATE = 64
MAX_POS = 16
OUTPUT_DIM = 4
LN_EPS = 1e-12
INIT_RANGE = 0.02          # config.initializer_range
LANES = 128
VEC_ROWS = 4 + 7 * N_LAYERS  # rows of the packed 1-D parameter array


# ----------------------------- in-kernel helpers -----------------------------
def _layernorm(x, g, b):
    mu = jnp.mean(x, axis=-1, keepdims=True)
    var = jnp.mean((x - mu) ** 2, axis=-1, keepdims=True)
    return (x - mu) * jax.lax.rsqrt(var + LN_EPS) * g + b


def _softmax_last(x):
    m = jnp.max(x, axis=-1, keepdims=True)
    e = jnp.exp(x - m)
    return e / jnp.sum(e, axis=-1, keepdims=True)


# --------------------------------- kernel ------------------------------------
def fused_predictor_kernel(emb_ref, mask_ref, vec_ref,
                           wqkv_ref, bqkv_ref, wo_ref, wi_ref, wf_ref,
                           dense_w_ref, out_w_ref, o_ref,
                           *, n_layers, n_heads, head_dim, hidden, inter):
    """Entire forward for ONE batch element (grid axis = batch)."""
    H, I = hidden, inter

    # ---- embeddings LayerNorm (vec rows 0/1 = emb LN gamma/beta) -------------
    x = _layernorm(emb_ref[...], vec_ref[0:1, :H], vec_ref[1:2, :H])       # [S, H]
    mask3 = mask_ref[...][None, :, :]            # [1,1,S] additive mask (hoisted)
    scale = 1.0 / (head_dim ** 0.5)

    # ---- transformer encoder layers (static unroll; x stays in VMEM/vregs) --
    for l in range(n_layers):
        r = 4 + 7 * l   # packed-vec rows: bo, ln1_g, ln1_b, bi, bf, ln2_g, ln2_b
        # All heads at once: per-head stacked weights -> one batched contraction.
        x_h = jnp.broadcast_to(x[None, :, :], (n_heads,) + x.shape)        # [nh,S,H]
        qkv = jnp.einsum('hsf,hfd->hsd', x_h, wqkv_ref[l],
                         preferred_element_type=jnp.float32) + bqkv_ref[l]  # [nh,S,3hd]
        q = qkv[..., :head_dim] * scale      # scale folded in once
        k = qkv[..., head_dim:2 * head_dim]
        v = qkv[..., 2 * head_dim:]
        s = jnp.einsum('hqd,hkd->hqk', q, k,
                       preferred_element_type=jnp.float32) + mask3         # [nh,S,S]
        p = _softmax_last(s)
        ctx = jnp.einsum('hqk,hkd->hqd', p, v,
                         preferred_element_type=jnp.float32)               # [nh,S,hd]
        attn_h = jnp.einsum('hsd,hdo->hso', ctx, wo_ref[l],
                            preferred_element_type=jnp.float32)            # [nh,S,H]
        attn = jnp.sum(attn_h, axis=0) + vec_ref[r:r + 1, :H]              # [S,H]
        x1 = _layernorm(x + attn,
                        vec_ref[r + 1:r + 2, :H], vec_ref[r + 2:r + 3, :H])
        # TODO(synk): HF CodeBERT/RoBERTa uses exact erf GELU; tanh approx used here.
        inter_act = jax.nn.gelu(
            jnp.dot(x1, wi_ref[l], preferred_element_type=jnp.float32)
            + vec_ref[r + 3:r + 4, :I],
            approximate=True)
        ffn = jnp.dot(inter_act, wf_ref[l],
                      preferred_element_type=jnp.float32) + vec_ref[r + 4:r + 5, :H]
        x = _layernorm(x1 + ffn,
                       vec_ref[r + 5:r + 6, :H], vec_ref[r + 6:r + 7, :H])

    # ---- classification head (dropout = identity) ----------------------------
    cls = x[0:1, :]                                                        # [1,H]
    hdn = jnp.tanh(jnp.dot(cls, dense_w_ref[...],
                           preferred_element_type=jnp.float32) + vec_ref[2:3, :H])
    # out_w is padded to 128 lanes; pad lanes carry a -1e9 bias -> softmax(pad)=0
    logits = jnp.dot(hdn, out_w_ref[...],
                     preferred_element_type=jnp.float32) + vec_ref[3:4, :]  # [1,128]
    o_ref[...] = _softmax_last(logits)                                      # lane-dense store


# ------------------------------ pallas wrapper --------------------------------
def run_fused(emb, mask3, packed):
    B, S, H = emb.shape

    kernel = functools.partial(
        fused_predictor_kernel, n_layers=N_LAYERS, n_heads=N_HEADS,
        head_dim=HEAD_DIM, hidden=HIDDEN, inter=INTERMEDIATE)

    def full(a):
        n = a.ndim
        return pl.BlockSpec(a.shape, lambda b, n=n: (0,) * n)

    return pl.pallas_call(
        kernel,
        out_shape=jax.ShapeDtypeStruct((B, 1, LANES), jnp.float32),
        grid_spec=pltpu.PrefetchScalarGridSpec(
            num_scalar_prefetch=0,
            grid=(B,),
            in_specs=[
                pl.BlockSpec((None, S, H), lambda b: (b, 0, 0)),    # emb   [S,H]
                pl.BlockSpec((None, 1, S), lambda b: (b, 0, 0)),    # mask  [1,S]
                full(packed['vec']),                                 # packed 1-D params
                full(packed['wqkv']),                                # [L,nh,H,3hd]
                full(packed['bqkv']),                                # [L,nh,1,3hd]
                full(packed['wo']),                                  # [L,nh,hd,H]
                full(packed['wi']),                                  # [L,H,I]
                full(packed['wf']),                                  # [L,I,H]
                full(packed['dense_w']),                             # [H,H]
                full(packed['out_w']),                               # [H,128]
            ],
            out_specs=pl.BlockSpec((None, 1, LANES), lambda b: (b, 0, 0)),
        ),
        compiler_params=pltpu.CompilerParams(
            dimension_semantics=("parallel",)),   # v7x: 2 TCs split the batch
    )(emb, mask3, packed['vec'], packed['wqkv'], packed['bqkv'], packed['wo'],
      packed['wi'], packed['wf'], packed['dense_w'], packed['out_w'])


# ---------------------------- parameter init ----------------------------------
def init_params(key):
    keys = jax.random.split(key, 64)
    ki = iter(range(64))

    def normal(shape):
        return INIT_RANGE * jax.random.normal(keys[next(ki)], shape, jnp.float32)

    params = {
        'word_emb': normal((VOCAB, HIDDEN)),
        'pos_emb': normal((MAX_POS, HIDDEN)),
        'type_emb': normal((2, HIDDEN)),
        'emb_ln_g': jnp.ones((HIDDEN,), jnp.float32),
        'emb_ln_b': jnp.zeros((HIDDEN,), jnp.float32),
        'layers': [],
        # classification head (init_predictor_head: normal(0, init_range), bias=0)
        'dense_w': normal((HIDDEN, HIDDEN)),
        'dense_b': jnp.zeros((HIDDEN,), jnp.float32),
        'out_w': normal((HIDDEN, OUTPUT_DIM)),
        'out_b': jnp.zeros((OUTPUT_DIM,), jnp.float32),
    }
    for _ in range(N_LAYERS):
        params['layers'].append({
            'wq': normal((HIDDEN, HIDDEN)), 'bq': jnp.zeros((HIDDEN,), jnp.float32),
            'wk': normal((HIDDEN, HIDDEN)), 'bk': jnp.zeros((HIDDEN,), jnp.float32),
            'wv': normal((HIDDEN, HIDDEN)), 'bv': jnp.zeros((HIDDEN,), jnp.float32),
            'wo': normal((HIDDEN, HIDDEN)), 'bo': jnp.zeros((HIDDEN,), jnp.float32),
            'ln1_g': jnp.ones((HIDDEN,), jnp.float32),
            'ln1_b': jnp.zeros((HIDDEN,), jnp.float32),
            'wi': normal((HIDDEN, INTERMEDIATE)),
            'bi': jnp.zeros((INTERMEDIATE,), jnp.float32),
            'wf': normal((INTERMEDIATE, HIDDEN)),
            'bf': jnp.zeros((HIDDEN,), jnp.float32),
            'ln2_g': jnp.ones((HIDDEN,), jnp.float32),
            'ln2_b': jnp.zeros((HIDDEN,), jnp.float32),
        })
    return params


def pack_params(params):
    """Host-side repack: per-head QKV/out-proj stacks + one lane-dense vec array."""
    H, I, nh, hd = HIDDEN, INTERMEDIATE, N_HEADS, HEAD_DIM

    vec = jnp.zeros((VEC_ROWS, LANES), jnp.float32)
    vec = vec.at[0, :H].set(params['emb_ln_g'])
    vec = vec.at[1, :H].set(params['emb_ln_b'])
    vec = vec.at[2, :H].set(params['dense_b'])
    vec = vec.at[3, :].set(-1e9)                        # pad lanes -> -inf logits
    vec = vec.at[3, :OUTPUT_DIM].set(params['out_b'])

    wqkv_l, bqkv_l, wo_l, wi_l, wf_l = [], [], [], [], []
    for l, lp in enumerate(params['layers']):
        r = 4 + 7 * l
        vec = vec.at[r, :H].set(lp['bo'])
        vec = vec.at[r + 1, :H].set(lp['ln1_g'])
        vec = vec.at[r + 2, :H].set(lp['ln1_b'])
        vec = vec.at[r + 3, :I].set(lp['bi'])
        vec = vec.at[r + 4, :H].set(lp['bf'])
        vec = vec.at[r + 5, :H].set(lp['ln2_g'])
        vec = vec.at[r + 6, :H].set(lp['ln2_b'])

        # per-head stacked QKV projection: [nh, H, 3*hd] with [h] = [Wq_h|Wk_h|Wv_h]
        wq = lp['wq'].reshape(H, nh, hd)
        wk = lp['wk'].reshape(H, nh, hd)
        wv = lp['wv'].reshape(H, nh, hd)
        wqkv_l.append(jnp.transpose(jnp.concatenate([wq, wk, wv], axis=-1), (1, 0, 2)))
        bq = lp['bq'].reshape(nh, hd)
        bk = lp['bk'].reshape(nh, hd)
        bv = lp['bv'].reshape(nh, hd)
        bqkv_l.append(jnp.concatenate([bq, bk, bv], axis=-1)[:, None, :])   # [nh,1,3hd]
        wo_l.append(lp['wo'].reshape(nh, hd, H))                            # [nh,hd,H]
        wi_l.append(lp['wi'])
        wf_l.append(lp['wf'])

    out_w_pad = jnp.zeros((H, LANES), jnp.float32).at[:, :OUTPUT_DIM].set(params['out_w'])

    return {
        'vec': vec,
        'wqkv': jnp.stack(wqkv_l),        # [L, nh, H, 3hd]
        'bqkv': jnp.stack(bqkv_l),        # [L, nh, 1, 3hd]
        'wo': jnp.stack(wo_l),            # [L, nh, hd, H]
        'wi': jnp.stack(wi_l),            # [L, H, I]
        'wf': jnp.stack(wf_l),            # [L, I, H]
        'dense_w': params['dense_w'],     # [H, H]
        'out_w': out_w_pad,               # [H, 128] lane-dense
        'word_emb': params['word_emb'],
        'pos_emb': params['pos_emb'],
        'type_emb': params['type_emb'],
    }


# ------------------------------ full forward ----------------------------------
def predictor_forward(packed, input_ids, attention_mask):
    B, S = input_ids.shape
    # Embedding gathers are data-dependent glue -> plain JAX outside the kernel.
    word = jnp.take(packed['word_emb'], input_ids, axis=0)               # [B,S,H]
    pos = packed['pos_emb'][:S][None, :, :]                              # [1,S,H]
    tok = packed['type_emb'][0][None, None, :]                           # [1,1,H]
    emb = (word + pos + tok).astype(jnp.float32)

    mask3 = ((1.0 - attention_mask.astype(jnp.float32)) * -10000.0)[:, None, :]  # [B,1,S]

    out_pad = run_fused(emb, mask3, packed)                              # [B,1,128]
    return out_pad[:, 0, :OUTPUT_DIM]                                    # [B,4]


@jax.jit
def predictor_predict(packed, input_ids, attention_mask):
    probs = predictor_forward(packed, input_ids, attention_mask)
    return probs, jnp.argmax(probs, axis=1)


# ----------------------------------- main --------------------------------------
if __name__ == "__main__":
    key = jax.random.PRNGKey(0)
    pkey, dkey = jax.random.split(key)
    params = init_params(pkey)
    packed = pack_params(params)

    B, S = 2, 8
    input_ids = jax.random.randint(dkey, (B, S), 0, VOCAB, dtype=jnp.int32)
    attention_mask = jnp.array(
        [[1, 1, 1, 1, 1, 1, 1, 1],
         [1, 1, 1, 1, 1, 0, 0, 0]], dtype=jnp.int32)

    probs, idx = predictor_predict(packed, input_ids, attention_mask)
    probs = jax.block_until_ready(probs)
    idx = jax.block_until_ready(idx)

    assert probs.shape == (B, OUTPUT_DIM)
    assert idx.shape == (B,)
    assert bool(jnp.all(jnp.isfinite(probs)))
    assert bool(jnp.allclose(jnp.sum(probs, axis=-1), 1.0, atol=1e-5))
    print("KERNEL_OK")
</pallas_src>

<mosaic_0001>
module attributes {stable_mosaic.version = 11 : i64} {
  func.func @fused_predictor_kernel(%arg0: i32, %arg1: memref<1x8x32xf32, #tpu.memory_space<vmem>>, %arg2: memref<1x1x8xf32, #tpu.memory_space<vmem>>, %arg3: memref<18x128xf32, #tpu.memory_space<vmem>>, %arg4: memref<2x4x32x24xf32, #tpu.memory_space<vmem>>, %arg5: memref<2x4x1x24xf32, #tpu.memory_space<vmem>>, %arg6: memref<2x4x8x32xf32, #tpu.memory_space<vmem>>, %arg7: memref<2x32x64xf32, #tpu.memory_space<vmem>>, %arg8: memref<2x64x32xf32, #tpu.memory_space<vmem>>, %arg9: memref<32x32xf32, #tpu.memory_space<vmem>>, %arg10: memref<32x128xf32, #tpu.memory_space<vmem>>, %arg11: memref<1x1x128xf32, #tpu.memory_space<vmem>>) attributes {dimension_semantics = [#tpu.dimension_semantics<parallel>], iteration_bounds = array<i64: 2>, scalar_prefetch = 0 : i64, scratch_operands = 0 : i64, tpu.core_type = #tpu.core_type<tc>, window_params = [{transform_indices = @transform_0, window_bounds = array<i64: 1, 8, 32>}, {transform_indices = @transform_1, window_bounds = array<i64: 1, 1, 8>}, {pipeline_mode = #tpu.pipeline_mode<synchronous>, transform_indices = @transform_2, window_bounds = array<i64: 18, 128>}, {pipeline_mode = #tpu.pipeline_mode<synchronous>, transform_indices = @transform_3, window_bounds = array<i64: 2, 4, 32, 24>}, {pipeline_mode = #tpu.pipeline_mode<synchronous>, transform_indices = @transform_4, window_bounds = array<i64: 2, 4, 1, 24>}, {pipeline_mode = #tpu.pipeline_mode<synchronous>, transform_indices = @transform_5, window_bounds = array<i64: 2, 4, 8, 32>}, {pipeline_mode = #tpu.pipeline_mode<synchronous>, transform_indices = @transform_6, window_bounds = array<i64: 2, 32, 64>}, {pipeline_mode = #tpu.pipeline_mode<synchronous>, transform_indices = @transform_7, window_bounds = array<i64: 2, 64, 32>}, {pipeline_mode = #tpu.pipeline_mode<synchronous>, transform_indices = @transform_8, window_bounds = array<i64: 32, 32>}, {pipeline_mode = #tpu.pipeline_mode<synchronous>, transform_indices = @transform_9, window_bounds = array<i64: 32, 128>}, {transform_indices = @transform_10, window_bounds = array<i64: 1, 1, 128>}]} {
    %c0 = arith.constant 0 : index
    %c0_0 = arith.constant 0 : index
    %c0_1 = arith.constant 0 : index
    %0 = vector.load %arg1[%c0, %c0_0, %c0_1] : memref<1x8x32xf32, #tpu.memory_space<vmem>>, vector<1x8x32xf32>
    %1 = vector.shape_cast %0 : vector<1x8x32xf32> to vector<8x32xf32>
    %c0_2 = arith.constant 0 : index
    %c0_3 = arith.constant 0 : index
    %2 = vector.load %arg3[%c0_2, %c0_3] : memref<18x128xf32, #tpu.memory_space<vmem>>, vector<1x32xf32>
    %c1 = arith.constant 1 : index
    %c0_4 = arith.constant 0 : index
    %3 = vector.load %arg3[%c1, %c0_4] : memref<18x128xf32, #tpu.memory_space<vmem>>, vector<1x32xf32>
    %cst = arith.constant dense<0.000000e+00> : vector<8xf32>
    %4 = vector.multi_reduction <add>, %1, %cst [1] : vector<8x32xf32> to vector<8xf32>
    %5 = vector.shape_cast %4 : vector<8xf32> to vector<8x1xf32>
    %cst_5 = arith.constant 3.200000e+01 : f32
    %6 = vector.broadcast %cst_5 : f32 to vector<8x1xf32>
    %7 = arith.divf %5, %6 : vector<8x1xf32>
    %8 = vector.broadcast %7 : vector<8x1xf32> to vector<8x32xf32>
    %9 = arith.subf %1, %8 : vector<8x32xf32>
    %10 = arith.mulf %9, %9 : vector<8x32xf32>
    %cst_6 = arith.constant dense<0.000000e+00> : vector<8xf32>
    %11 = vector.multi_reduction <add>, %10, %cst_6 [1] : vector<8x32xf32> to vector<8xf32>
    %12 = vector.shape_cast %11 : vector<8xf32> to vector<8x1xf32>
    %cst_7 = arith.constant 3.200000e+01 : f32
    %13 = vector.broadcast %cst_7 : f32 to vector<8x1xf32>
    %14 = arith.divf %12, %13 : vector<8x1xf32>
    %15 = vector.broadcast %7 : vector<8x1xf32> to vector<8x32xf32>
    %16 = arith.subf %1, %15 : vector<8x32xf32>
    %cst_8 = arith.constant 9.99999996E-13 : f32
    %17 = vector.broadcast %cst_8 : f32 to vector<8x1xf32>
    %18 = arith.addf %14, %17 : vector<8x1xf32>
    %19 = math.rsqrt %18 : vector<8x1xf32>
    %20 = vector.broadcast %19 : vector<8x1xf32> to vector<8x32xf32>
    %21 = arith.mulf %16, %20 : vector<8x32xf32>
    %22 = vector.broadcast %2 : vector<1x32xf32> to vector<8x32xf32>
    %23 = arith.mulf %21, %22 : vector<8x32xf32>
    %24 = vector.broadcast %3 : vector<1x32xf32> to vector<8x32xf32>
    %25 = arith.addf %23, %24 : vector<8x32xf32>
    %c0_9 = arith.constant 0 : index
    %c0_10 = arith.constant 0 : index
    %c0_11 = arith.constant 0 : index
    %26 = vector.load %arg2[%c0_9, %c0_10, %c0_11] : memref<1x1x8xf32, #tpu.memory_space<vmem>>, vector<1x1x8xf32>
    %27 = vector.shape_cast %26 : vector<1x1x8xf32> to vector<1x8xf32>
    %28 = vector.shape_cast %27 : vector<1x8xf32> to vector<1x1x8xf32>
    %29 = vector.shape_cast %25 : vector<8x32xf32> to vector<1x8x32xf32>
    %30 = vector.shape_cast %29 : vector<1x8x32xf32> to vector<1x8x32xf32>
    %31 = vector.broadcast %30 : vector<1x8x32xf32> to vector<4x8x32xf32>
    %c0_12 = arith.constant 0 : index
    %c0_13 = arith.constant 0 : index
    %c0_14 = arith.constant 0 : index
    %c0_15 = arith.constant 0 : index
    %32 = vector.load %arg4[%c0_12, %c0_13, %c0_14, %c0_15] : memref<2x4x32x24xf32, #tpu.memory_space<vmem>>, vector<1x4x32x24xf32>
    %33 = vector.shape_cast %32 : vector<1x4x32x24xf32> to vector<4x32x24xf32>
    "tpu.trace_start"() <{level = 10 : i32, message = "hsf,hfd->hsd"}> : () -> ()
    %cst_16 = arith.constant dense<0.000000e+00> : vector<4x8x24xf32>
    %34 = tpu.matmul %31, %33, %cst_16 {dimension_numbers = #tpu.dot_dimension_numbers<[2], [1], [1], [2], [0, 0, 0, 1, 1, 2], [0], [0]>} : vector<4x8x32xf32>, vector<4x32x24xf32>, vector<4x8x24xf32> -> vector<4x8x24xf32>
    "tpu.trace_stop"() : () -> ()
    %c0_17 = arith.constant 0 : index
    %c0_18 = arith.constant 0 : index
    %c0_19 = arith.constant 0 : index
    %c0_20 = arith.constant 0 : index
    %35 = vector.load %arg5[%c0_17, %c0_18, %c0_19, %c0_20] : memref<2x4x1x24xf32, #tpu.memory_space<vmem>>, vector<1x4x1x24xf32>
    %36 = vector.shape_cast %35 : vector<1x4x1x24xf32> to vector<4x1x24xf32>
    %37 = vector.broadcast %36 : vector<4x1x24xf32> to vector<4x8x24xf32>
    %38 = arith.addf %34, %37 : vector<4x8x24xf32>
    %39 = vector.extract_strided_slice %38 {offsets = [0, 0, 0], sizes = [4, 8, 8], strides = [1, 1, 1]} : vector<4x8x24xf32> to vector<4x8x8xf32>
    %cst_21 = arith.constant 0.353553385 : f32
    %40 = vector.broadcast %cst_21 : f32 to vector<4x8x8xf32>
    %41 = arith.mulf %39, %40 : vector<4x8x8xf32>
    %42 = vector.extract_strided_slice %38 {offsets = [0, 0, 8], sizes = [4, 8, 8], strides = [1, 1, 1]} : vector<4x8x24xf32> to vector<4x8x8xf32>
    %43 = vector.extract_strided_slice %38 {offsets = [0, 0, 16], sizes = [4, 8, 8], strides = [1, 1, 1]} : vector<4x8x24xf32> to vector<4x8x8xf32>
    "tpu.trace_start"() <{level = 10 : i32, message = "hqd,hkd->hqk"}> : () -> ()
    %cst_22 = arith.constant dense<0.000000e+00> : vector<4x8x8xf32>
    %44 = tpu.matmul %41, %42, %cst_22 {dimension_numbers = #tpu.dot_dimension_numbers<[2], [2], [1], [1], [0, 0, 0, 1, 1, 1], [0], [0]>} : vector<4x8x8xf32>, vector<4x8x8xf32>, vector<4x8x8xf32> -> vector<4x8x8xf32>
    "tpu.trace_stop"() : () -> ()
    %45 = vector.broadcast %28 : vector<1x1x8xf32> to vector<4x8x8xf32>
    %46 = arith.addf %44, %45 : vector<4x8x8xf32>
    %cst_23 = arith.constant dense<0xFF800000> : vector<4x8xf32>
    %47 = vector.multi_reduction <maximumf>, %46, %cst_23 [2] : vector<4x8x8xf32> to vector<4x8xf32>
    %48 = vector.shape_cast %47 : vector<4x8xf32> to vector<4x8x1xf32>
    %49 = vector.broadcast %48 : vector<4x8x1xf32> to vector<4x8x8xf32>
    %50 = arith.subf %46, %49 : vector<4x8x8xf32>
    %51 = math.exp %50 : vector<4x8x8xf32>
    %cst_24 = arith.constant dense<0.000000e+00> : vector<4x8xf32>
    %52 = vector.multi_reduction <add>, %51, %cst_24 [2] : vector<4x8x8xf32> to vector<4x8xf32>
    %53 = vector.shape_cast %52 : vector<4x8xf32> to vector<4x8x1xf32>
    %54 = vector.broadcast %53 : vector<4x8x1xf32> to vector<4x8x8xf32>
    %55 = arith.divf %51, %54 : vector<4x8x8xf32>
    "tpu.trace_start"() <{level = 10 : i32, message = "hqk,hkd->hqd"}> : () -> ()
    %cst_25 = arith.constant dense<0.000000e+00> : vector<4x8x8xf32>
    %56 = tpu.matmul %55, %43, %cst_25 {dimension_numbers = #tpu.dot_dimension_numbers<[2], [1], [1], [2], [0, 0, 0, 1, 1, 2], [0], [0]>} : vector<4x8x8xf32>, vector<4x8x8xf32>, vector<4x8x8xf32> -> vector<4x8x8xf32>
    "tpu.trace_stop"() : () -> ()
    %c0_26 = arith.constant 0 : index
    %c0_27 = arith.constant 0 : index
    %c0_28 = arith.constant 0 : index
    %c0_29 = arith.constant 0 : index
    %57 = vector.load %arg6[%c0_26, %c0_27, %c0_28, %c0_29] : memref<2x4x8x32xf32, #tpu.memory_space<vmem>>, vector<1x4x8x32xf32>
    %58 = vector.shape_cast %57 : vector<1x4x8x32xf32> to vector<4x8x32xf32>
    "tpu.trace_start"() <{level = 10 : i32, message = "hsd,hdo->hso"}> : () -> ()
    %cst_30 = arith.constant dense<0.000000e+00> : vector<4x8x32xf32>
    %59 = tpu.matmul %56, %58, %cst_30 {dimension_numbers = #tpu.dot_dimension_numbers<[2], [1], [1], [2], [0, 0, 0, 1, 1, 2], [0], [0]>} : vector<4x8x8xf32>, vector<4x8x32xf32>, vector<4x8x32xf32> -> vector<4x8x32xf32>
    "tpu.trace_stop"() : () -> ()
    %cst_31 = arith.constant dense<0.000000e+00> : vector<8x32xf32>
    %60 = vector.multi_reduction <add>, %59, %cst_31 [0] : vector<4x8x32xf32> to vector<8x32xf32>
    %c4 = arith.constant 4 : index
    %c0_32 = arith.constant 0 : index
    %61 = vector.load %arg3[%c4, %c0_32] : memref<18x128xf32, #tpu.memory_space<vmem>>, vector<1x32xf32>
    %62 = vector.broadcast %61 : vector<1x32xf32> to vector<8x32xf32>
    %63 = arith.addf %60, %62 : vector<8x32xf32>
    %64 = arith.addf %25, %63 : vector<8x32xf32>
    %c5 = arith.constant 5 : index
    %c0_33 = arith.constant 0 : index
    %65 = vector.load %arg3[%c5, %c0_33] : memref<18x128xf32, #tpu.memory_space<vmem>>, vector<1x32xf32>
    %c6 = arith.constant 6 : index
    %c0_34 = arith.constant 0 : index
    %66 = vector.load %arg3[%c6, %c0_34] : memref<18x128xf32, #tpu.memory_space<vmem>>, vector<1x32xf32>
    %cst_35 = arith.constant dense<0.000000e+00> : vector<8xf32>
    %67 = vector.multi_reduction <add>, %64, %cst_35 [1] : vector<8x32xf32> to vector<8xf32>
    %68 = vector.shape_cast %67 : vector<8xf32> to vector<8x1xf32>
    %cst_36 = arith.constant 3.200000e+01 : f32
    %69 = vector.broadcast %cst_36 : f32 to vector<8x1xf32>
    %70 = arith.divf %68, %69 : vector<8x1xf32>
    %71 = vector.broadcast %70 : vector<8x1xf32> to vector<8x32xf32>
    %72 = arith.subf %64, %71 : vector<8x32xf32>
    %73 = arith.mulf %72, %72 : vector<8x32xf32>
    %cst_37 = arith.constant dense<0.000000e+00> : vector<8xf32>
    %74 = vector.multi_reduction <add>, %73, %cst_37 [1] : vector<8x32xf32> to vector<8xf32>
    %75 = vector.shape_cast %74 : vector<8xf32> to vector<8x1xf32>
    %cst_38 = arith.constant 3.200000e+01 : f32
    %76 = vector.broadcast %cst_38 : f32 to vector<8x1xf32>
    %77 = arith.divf %75, %76 : vector<8x1xf32>
    %78 = vector.broadcast %70 : vector<8x1xf32> to vector<8x32xf32>
    %79 = arith.subf %64, %78 : vector<8x32xf32>
    %cst_39 = arith.constant 9.99999996E-13 : f32
    %80 = vector.broadcast %cst_39 : f32 to vector<8x1xf32>
    %81 = arith.addf %77, %80 : vector<8x1xf32>
    %82 = math.rsqrt %81 : vector<8x1xf32>
    %83 = vector.broadcast %82 : vector<8x1xf32> to vector<8x32xf32>
    %84 = arith.mulf %79, %83 : vector<8x32xf32>
    %85 = vector.broadcast %65 : vector<1x32xf32> to vector<8x32xf32>
    %86 = arith.mulf %84, %85 : vector<8x32xf32>
    %87 = vector.broadcast %66 : vector<1x32xf32> to vector<8x32xf32>
    %88 = arith.addf %86, %87 : vector<8x32xf32>
    %c0_40 = arith.constant 0 : index
    %c0_41 = arith.constant 0 : index
    %c0_42 = arith.constant 0 : index
    %89 = vector.load %arg7[%c0_40, %c0_41, %c0_42] : memref<2x32x64xf32, #tpu.memory_space<vmem>>, vector<1x32x64xf32>
    %90 = vector.shape_cast %89 : vector<1x32x64xf32> to vector<32x64xf32>
    %cst_43 = arith.constant dense<0.000000e+00> : vector<8x64xf32>
    %91 = tpu.matmul %88, %90, %cst_43 {dimension_numbers = #tpu.dot_dimension_numbers<[1], [0], [0], [1], [0, 0, 1, 1], [], []>} : vector<8x32xf32>, vector<32x64xf32>, vector<8x64xf32> -> vector<8x64xf32>
    %c7 = arith.constant 7 : index
    %c0_44 = arith.constant 0 : index
    %92 = vector.load %arg3[%c7, %c0_44] : memref<18x128xf32, #tpu.memory_space<vmem>>, vector<1x64xf32>
    %93 = vector.broadcast %92 : vector<1x64xf32> to vector<8x64xf32>
    %94 = arith.addf %91, %93 : vector<8x64xf32>
    %95 = arith.mulf %94, %94 : vector<8x64xf32>
    %96 = arith.mulf %94, %95 : vector<8x64xf32>
    %cst_45 = arith.constant 4.471500e-02 : f32
    %97 = vector.broadcast %cst_45 : f32 to vector<8x64xf32>
    %98 = arith.mulf %97, %96 : vector<8x64xf32>
    %99 = arith.addf %94, %98 : vector<8x64xf32>
    %cst_46 = arith.constant 0.797884583 : f32
    %100 = vector.broadcast %cst_46 : f32 to vector<8x64xf32>
    %101 = arith.mulf %100, %99 : vector<8x64xf32>
    %102 = math.tanh %101 : vector<8x64xf32>
    %cst_47 = arith.constant 1.000000e+00 : f32
    %103 = vector.broadcast %cst_47 : f32 to vector<8x64xf32>
    %104 = arith.addf %103, %102 : vector<8x64xf32>
    %cst_48 = arith.constant 5.000000e-01 : f32
    %105 = vector.broadcast %cst_48 : f32 to vector<8x64xf32>
    %106 = arith.mulf %105, %104 : vector<8x64xf32>
    %107 = arith.mulf %94, %106 : vector<8x64xf32>
    %c0_49 = arith.constant 0 : index
    %c0_50 = arith.constant 0 : index
    %c0_51 = arith.constant 0 : index
    %108 = vector.load %arg8[%c0_49, %c0_50, %c0_51] : memref<2x64x32xf32, #tpu.memory_space<vmem>>, vector<1x64x32xf32>
    %109 = vector.shape_cast %108 : vector<1x64x32xf32> to vector<64x32xf32>
    %cst_52 = arith.constant dense<0.000000e+00> : vector<8x32xf32>
    %110 = tpu.matmul %107, %109, %cst_52 {dimension_numbers = #tpu.dot_dimension_numbers<[1], [0], [0], [1], [0, 0, 1, 1], [], []>} : vector<8x64xf32>, vector<64x32xf32>, vector<8x32xf32> -> vector<8x32xf32>
    %c8 = arith.constant 8 : index
    %c0_53 = arith.constant 0 : index
    %111 = vector.load %arg3[%c8, %c0_53] : memref<18x128xf32, #tpu.memory_space<vmem>>, vector<1x32xf32>
    %112 = vector.broadcast %111 : vector<1x32xf32> to vector<8x32xf32>
    %113 = arith.addf %110, %112 : vector<8x32xf32>
    %114 = arith.addf %88, %113 : vector<8x32xf32>
    %c9 = arith.constant 9 : index
    %c0_54 = arith.constant 0 : index
    %115 = vector.load %arg3[%c9, %c0_54] : memref<18x128xf32, #tpu.memory_space<vmem>>, vector<1x32xf32>
    %c10 = arith.constant 10 : index
    %c0_55 = arith.constant 0 : index
    %116 = vector.load %arg3[%c10, %c0_55] : memref<18x128xf32, #tpu.memory_space<vmem>>, vector<1x32xf32>
    %cst_56 = arith.constant dense<0.000000e+00> : vector<8xf32>
    %117 = vector.multi_reduction <add>, %114, %cst_56 [1] : vector<8x32xf32> to vector<8xf32>
    %118 = vector.shape_cast %117 : vector<8xf32> to vector<8x1xf32>
    %cst_57 = arith.constant 3.200000e+01 : f32
    %119 = vector.broadcast %cst_57 : f32 to vector<8x1xf32>
    %120 = arith.divf %118, %119 : vector<8x1xf32>
    %121 = vector.broadcast %120 : vector<8x1xf32> to vector<8x32xf32>
    %122 = arith.subf %114, %121 : vector<8x32xf32>
    %123 = arith.mulf %122, %122 : vector<8x32xf32>
    %cst_58 = arith.constant dense<0.000000e+00> : vector<8xf32>
    %124 = vector.multi_reduction <add>, %123, %cst_58 [1] : vector<8x32xf32> to vector<8xf32>
    %125 = vector.shape_cast %124 : vector<8xf32> to vector<8x1xf32>
    %cst_59 = arith.constant 3.200000e+01 : f32
    %126 = vector.broadcast %cst_59 : f32 to vector<8x1xf32>
    %127 = arith.divf %125, %126 : vector<8x1xf32>
    %128 = vector.broadcast %120 : vector<8x1xf32> to vector<8x32xf32>
    %129 = arith.subf %114, %128 : vector<8x32xf32>
    %cst_60 = arith.constant 9.99999996E-13 : f32
    %130 = vector.broadcast %cst_60 : f32 to vector<8x1xf32>
    %131 = arith.addf %127, %130 : vector<8x1xf32>
    %132 = math.rsqrt %131 : vector<8x1xf32>
    %133 = vector.broadcast %132 : vector<8x1xf32> to vector<8x32xf32>
    %134 = arith.mulf %129, %133 : vector<8x32xf32>
    %135 = vector.broadcast %115 : vector<1x32xf32> to vector<8x32xf32>
    %136 = arith.mulf %134, %135 : vector<8x32xf32>
    %137 = vector.broadcast %116 : vector<1x32xf32> to vector<8x32xf32>
    %138 = arith.addf %136, %137 : vector<8x32xf32>
    %139 = vector.shape_cast %138 : vector<8x32xf32> to vector<1x8x32xf32>
    %140 = vector.shape_cast %139 : vector<1x8x32xf32> to vector<1x8x32xf32>
    %141 = vector.broadcast %140 : vector<1x8x32xf32> to vector<4x8x32xf32>
    %c1_61 = arith.constant 1 : index
    %c0_62 = arith.constant 0 : index
    %c0_63 = arith.constant 0 : index
    %c0_64 = arith.constant 0 : index
    %142 = vector.load %arg4[%c1_61, %c0_62, %c0_63, %c0_64] : memref<2x4x32x24xf32, #tpu.memory_space<vmem>>, vector<1x4x32x24xf32>
    %143 = vector.shape_cast %142 : vector<1x4x32x24xf32> to vector<4x32x24xf32>
    "tpu.trace_start"() <{level = 10 : i32, message = "hsf,hfd->hsd"}> : () -> ()
    %cst_65 = arith.constant dense<0.000000e+00> : vector<4x8x24xf32>
    %144 = tpu.matmul %141, %143, %cst_65 {dimension_numbers = #tpu.dot_dimension_numbers<[2], [1], [1], [2], [0, 0, 0, 1, 1, 2], [0], [0]>} : vector<4x8x32xf32>, vector<4x32x24xf32>, vector<4x8x24xf32> -> vector<4x8x24xf32>
    "tpu.trace_stop"() : () -> ()
    %c1_66 = arith.constant 1 : index
    %c0_67 = arith.constant 0 : index
    %c0_68 = arith.constant 0 : index
    %c0_69 = arith.constant 0 : index
    %145 = vector.load %arg5[%c1_66, %c0_67, %c0_68, %c0_69] : memref<2x4x1x24xf32, #tpu.memory_space<vmem>>, vector<1x4x1x24xf32>
    %146 = vector.shape_cast %145 : vector<1x4x1x24xf32> to vector<4x1x24xf32>
    %147 = vector.broadcast %146 : vector<4x1x24xf32> to vector<4x8x24xf32>
    %148 = arith.addf %144, %147 : vector<4x8x24xf32>
    %149 = vector.extract_strided_slice %148 {offsets = [0, 0, 0], sizes = [4, 8, 8], strides = [1, 1, 1]} : vector<4x8x24xf32> to vector<4x8x8xf32>
    %cst_70 = arith.constant 0.353553385 : f32
    %150 = vector.broadcast %cst_70 : f32 to vector<4x8x8xf32>
    %151 = arith.mulf %149, %150 : vector<4x8x8xf32>
    %152 = vector.extract_strided_slice %148 {offsets = [0, 0, 8], sizes = [4, 8, 8], strides = [1, 1, 1]} : vector<4x8x24xf32> to vector<4x8x8xf32>
    %153 = vector.extract_strided_slice %148 {offsets = [0, 0, 16], sizes = [4, 8, 8], strides = [1, 1, 1]} : vector<4x8x24xf32> to vector<4x8x8xf32>
    "tpu.trace_start"() <{level = 10 : i32, message = "hqd,hkd->hqk"}> : () -> ()
    %cst_71 = arith.constant dense<0.000000e+00> : vector<4x8x8xf32>
    %154 = tpu.matmul %151, %152, %cst_71 {dimension_numbers = #tpu.dot_dimension_numbers<[2], [2], [1], [1], [0, 0, 0, 1, 1, 1], [0], [0]>} : vector<4x8x8xf32>, vector<4x8x8xf32>, vector<4x8x8xf32> -> vector<4x8x8xf32>
    "tpu.trace_stop"() : () -> ()
    %155 = vector.broadcast %28 : vector<1x1x8xf32> to vector<4x8x8xf32>
    %156 = arith.addf %154, %155 : vector<4x8x8xf32>
    %cst_72 = arith.constant dense<0xFF800000> : vector<4x8xf32>
    %157 = vector.multi_reduction <maximumf>, %156, %cst_72 [2] : vector<4x8x8xf32> to vector<4x8xf32>
    %158 = vector.shape_cast %157 : vector<4x8xf32> to vector<4x8x1xf32>
    %159 = vector.broadcast %158 : vector<4x8x1xf32> to vector<4x8x8xf32>
    %160 = arith.subf %156, %159 : vector<4x8x8xf32>
    %161 = math.exp %160 : vector<4x8x8xf32>
    %cst_73 = arith.constant dense<0.000000e+00> : vector<4x8xf32>
    %162 = vector.multi_reduction <add>, %161, %cst_73 [2] : vector<4x8x8xf32> to vector<4x8xf32>
    %163 = vector.shape_cast %162 : vector<4x8xf32> to vector<4x8x1xf32>
    %164 = vector.broadcast %163 : vector<4x8x1xf32> to vector<4x8x8xf32>
    %165 = arith.divf %161, %164 : vector<4x8x8xf32>
    "tpu.trace_start"() <{level = 10 : i32, message = "hqk,hkd->hqd"}> : () -> ()
    %cst_74 = arith.constant dense<0.000000e+00> : vector<4x8x8xf32>
    %166 = tpu.matmul %165, %153, %cst_74 {dimension_numbers = #tpu.dot_dimension_numbers<[2], [1], [1], [2], [0, 0, 0, 1, 1, 2], [0], [0]>} : vector<4x8x8xf32>, vector<4x8x8xf32>, vector<4x8x8xf32> -> vector<4x8x8xf32>
    "tpu.trace_stop"() : () -> ()
    %c1_75 = arith.constant 1 : index
    %c0_76 = arith.constant 0 : index
    %c0_77 = arith.constant 0 : index
    %c0_78 = arith.constant 0 : index
    %167 = vector.load %arg6[%c1_75, %c0_76, %c0_77, %c0_78] : memref<2x4x8x32xf32, #tpu.memory_space<vmem>>, vector<1x4x8x32xf32>
    %168 = vector.shape_cast %167 : vector<1x4x8x32xf32> to vector<4x8x32xf32>
    "tpu.trace_start"() <{level = 10 : i32, message = "hsd,hdo->hso"}> : () -> ()
    %cst_79 = arith.constant dense<0.000000e+00> : vector<4x8x32xf32>
    %169 = tpu.matmul %166, %168, %cst_79 {dimension_numbers = #tpu.dot_dimension_numbers<[2], [1], [1], [2], [0, 0, 0, 1, 1, 2], [0], [0]>} : vector<4x8x8xf32>, vector<4x8x32xf32>, vector<4x8x32xf32> -> vector<4x8x32xf32>
    "tpu.trace_stop"() : () -> ()
    %cst_80 = arith.constant dense<0.000000e+00> : vector<8x32xf32>
    %170 = vector.multi_reduction <add>, %169, %cst_80 [0] : vector<4x8x32xf32> to vector<8x32xf32>
    %c11 = arith.constant 11 : index
    %c0_81 = arith.constant 0 : index
    %171 = vector.load %arg3[%c11, %c0_81] : memref<18x128xf32, #tpu.memory_space<vmem>>, vector<1x32xf32>
    %172 = vector.broadcast %171 : vector<1x32xf32> to vector<8x32xf32>
    %173 = arith.addf %170, %172 : vector<8x32xf32>
    %174 = arith.addf %138, %173 : vector<8x32xf32>
    %c12 = arith.constant 12 : index
    %c0_82 = arith.constant 0 : index
    %175 = vector.load %arg3[%c12, %c0_82] : memref<18x128xf32, #tpu.memory_space<vmem>>, vector<1x32xf32>
    %c13 = arith.constant 13 : index
    %c0_83 = arith.constant 0 : index
    %176 = vector.load %arg3[%c13, %c0_83] : memref<18x128xf32, #tpu.memory_space<vmem>>, vector<1x32xf32>
    %cst_84 = arith.constant dense<0.000000e+00> : vector<8xf32>
    %177 = vector.multi_reduction <add>, %174, %cst_84 [1] : vector<8x32xf32> to vector<8xf32>
    %178 = vector.shape_cast %177 : vector<8xf32> to vector<8x1xf32>
    %cst_85 = arith.constant 3.200000e+01 : f32
    %179 = vector.broadcast %cst_85 : f32 to vector<8x1xf32>
    %180 = arith.divf %178, %179 : vector<8x1xf32>
    %181 = vector.broadcast %180 : vector<8x1xf32> to vector<8x32xf32>
    %182 = arith.subf %174, %181 : vector<8x32xf32>
    %183 = arith.mulf %182, %182 : vector<8x32xf32>
    %cst_86 = arith.constant dense<0.000000e+00> : vector<8xf32>
    %184 = vector.multi_reduction <add>, %183, %cst_86 [1] : vector<8x32xf32> to vector<8xf32>
    %185 = vector.shape_cast %184 : vector<8xf32> to vector<8x1xf32>
    %cst_87 = arith.constant 3.200000e+01 : f32
    %186 = vector.broadcast %cst_87 : f32 to vector<8x1xf32>
    %187 = arith.divf %185, %186 : vector<8x1xf32>
    %188 = vector.broadcast %180 : vector<8x1xf32> to vector<8x32xf32>
    %189 = arith.subf %174, %188 : vector<8x32xf32>
    %cst_88 = arith.constant 9.99999996E-13 : f32
    %190 = vector.broadcast %cst_88 : f32 to vector<8x1xf32>
    %191 = arith.addf %187, %190 : vector<8x1xf32>
    %192 = math.rsqrt %191 : vector<8x1xf32>
    %193 = vector.broadcast %192 : vector<8x1xf32> to vector<8x32xf32>
    %194 = arith.mulf %189, %193 : vector<8x32xf32>
    %195 = vector.broadcast %175 : vector<1x32xf32> to vector<8x32xf32>
    %196 = arith.mulf %194, %195 : vector<8x32xf32>
    %197 = vector.broadcast %176 : vector<1x32xf32> to vector<8x32xf32>
    %198 = arith.addf %196, %197 : vector<8x32xf32>
    %c1_89 = arith.constant 1 : index
    %c0_90 = arith.constant 0 : index
    %c0_91 = arith.constant 0 : index
    %199 = vector.load %arg7[%c1_89, %c0_90, %c0_91] : memref<2x32x64xf32, #tpu.memory_space<vmem>>, vector<1x32x64xf32>
    %200 = vector.shape_cast %199 : vector<1x32x64xf32> to vector<32x64xf32>
    %cst_92 = arith.constant dense<0.000000e+00> : vector<8x64xf32>
    %201 = tpu.matmul %198, %200, %cst_92 {dimension_numbers = #tpu.dot_dimension_numbers<[1], [0], [0], [1], [0, 0, 1, 1], [], []>} : vector<8x32xf32>, vector<32x64xf32>, vector<8x64xf32> -> vector<8x64xf32>
    %c14 = arith.constant 14 : index
    %c0_93 = arith.constant 0 : index
    %202 = vector.load %arg3[%c14, %c0_93] : memref<18x128xf32, #tpu.memory_space<vmem>>, vector<1x64xf32>
    %203 = vector.broadcast %202 : vector<1x64xf32> to vector<8x64xf32>
    %204 = arith.addf %201, %203 : vector<8x64xf32>
    %205 = arith.mulf %204, %204 : vector<8x64xf32>
    %206 = arith.mulf %204, %205 : vector<8x64xf32>
    %cst_94 = arith.constant 4.471500e-02 : f32
    %207 = vector.broadcast %cst_94 : f32 to vector<8x64xf32>
    %208 = arith.mulf %207, %206 : vector<8x64xf32>
    %209 = arith.addf %204, %208 : vector<8x64xf32>
    %cst_95 = arith.constant 0.797884583 : f32
    %210 = vector.broadcast %cst_95 : f32 to vector<8x64xf32>
    %211 = arith.mulf %210, %209 : vector<8x64xf32>
    %212 = math.tanh %211 : vector<8x64xf32>
    %cst_96 = arith.constant 1.000000e+00 : f32
    %213 = vector.broadcast %cst_96 : f32 to vector<8x64xf32>
    %214 = arith.addf %213, %212 : vector<8x64xf32>
    %cst_97 = arith.constant 5.000000e-01 : f32
    %215 = vector.broadcast %cst_97 : f32 to vector<8x64xf32>
    %216 = arith.mulf %215, %214 : vector<8x64xf32>
    %217 = arith.mulf %204, %216 : vector<8x64xf32>
    %c1_98 = arith.constant 1 : index
    %c0_99 = arith.constant 0 : index
    %c0_100 = arith.constant 0 : index
    %218 = vector.load %arg8[%c1_98, %c0_99, %c0_100] : memref<2x64x32xf32, #tpu.memory_space<vmem>>, vector<1x64x32xf32>
    %219 = vector.shape_cast %218 : vector<1x64x32xf32> to vector<64x32xf32>
    %cst_101 = arith.constant dense<0.000000e+00> : vector<8x32xf32>
    %220 = tpu.matmul %217, %219, %cst_101 {dimension_numbers = #tpu.dot_dimension_numbers<[1], [0], [0], [1], [0, 0, 1, 1], [], []>} : vector<8x64xf32>, vector<64x32xf32>, vector<8x32xf32> -> vector<8x32xf32>
    %c15 = arith.constant 15 : index
    %c0_102 = arith.constant 0 : index
    %221 = vector.load %arg3[%c15, %c0_102] : memref<18x128xf32, #tpu.memory_space<vmem>>, vector<1x32xf32>
    %222 = vector.broadcast %221 : vector<1x32xf32> to vector<8x32xf32>
    %223 = arith.addf %220, %222 : vector<8x32xf32>
    %224 = arith.addf %198, %223 : vector<8x32xf32>
    %c16 = arith.constant 16 : index
    %c0_103 = arith.constant 0 : index
    %225 = vector.load %arg3[%c16, %c0_103] : memref<18x128xf32, #tpu.memory_space<vmem>>, vector<1x32xf32>
    %c17 = arith.constant 17 : index
    %c0_104 = arith.constant 0 : index
    %226 = vector.load %arg3[%c17, %c0_104] : memref<18x128xf32, #tpu.memory_space<vmem>>, vector<1x32xf32>
    %cst_105 = arith.constant dense<0.000000e+00> : vector<8xf32>
    %227 = vector.multi_reduction <add>, %224, %cst_105 [1] : vector<8x32xf32> to vector<8xf32>
    %228 = vector.shape_cast %227 : vector<8xf32> to vector<8x1xf32>
    %cst_106 = arith.constant 3.200000e+01 : f32
    %229 = vector.broadcast %cst_106 : f32 to vector<8x1xf32>
    %230 = arith.divf %228, %229 : vector<8x1xf32>
    %231 = vector.broadcast %230 : vector<8x1xf32> to vector<8x32xf32>
    %232 = arith.subf %224, %231 : vector<8x32xf32>
    %233 = arith.mulf %232, %232 : vector<8x32xf32>
    %cst_107 = arith.constant dense<0.000000e+00> : vector<8xf32>
    %234 = vector.multi_reduction <add>, %233, %cst_107 [1] : vector<8x32xf32> to vector<8xf32>
    %235 = vector.shape_cast %234 : vector<8xf32> to vector<8x1xf32>
    %cst_108 = arith.constant 3.200000e+01 : f32
    %236 = vector.broadcast %cst_108 : f32 to vector<8x1xf32>
    %237 = arith.divf %235, %236 : vector<8x1xf32>
    %238 = vector.broadcast %230 : vector<8x1xf32> to vector<8x32xf32>
    %239 = arith.subf %224, %238 : vector<8x32xf32>
    %cst_109 = arith.constant 9.99999996E-13 : f32
    %240 = vector.broadcast %cst_109 : f32 to vector<8x1xf32>
    %241 = arith.addf %237, %240 : vector<8x1xf32>
    %242 = math.rsqrt %241 : vector<8x1xf32>
    %243 = vector.broadcast %242 : vector<8x1xf32> to vector<8x32xf32>
    %244 = arith.mulf %239, %243 : vector<8x32xf32>
    %245 = vector.broadcast %225 : vector<1x32xf32> to vector<8x32xf32>
    %246 = arith.mulf %244, %245 : vector<8x32xf32>
    %247 = vector.broadcast %226 : vector<1x32xf32> to vector<8x32xf32>
    %248 = arith.addf %246, %247 : vector<8x32xf32>
    %249 = vector.extract_strided_slice %248 {offsets = [0, 0], sizes = [1, 32], strides = [1, 1]} : vector<8x32xf32> to vector<1x32xf32>
    %c0_110 = arith.constant 0 : index
    %c0_111 = arith.constant 0 : index
    %250 = vector.load %arg9[%c0_110, %c0_111] : memref<32x32xf32, #tpu.memory_space<vmem>>, vector<32x32xf32>
    %cst_112 = arith.constant dense<0.000000e+00> : vector<1x32xf32>
    %251 = tpu.matmul %249, %250, %cst_112 {dimension_numbers = #tpu.dot_dimension_numbers<[1], [0], [0], [1], [0, 0, 1, 1], [], []>} : vector<1x32xf32>, vector<32x32xf32>, vector<1x32xf32> -> vector<1x32xf32>
    %c2 = arith.constant 2 : index
    %c0_113 = arith.constant 0 : index
    %252 = vector.load %arg3[%c2, %c0_113] : memref<18x128xf32, #tpu.memory_space<vmem>>, vector<1x32xf32>
    %253 = arith.addf %251, %252 : vector<1x32xf32>
    %254 = math.tanh %253 : vector<1x32xf32>
    %c0_114 = arith.constant 0 : index
    %c0_115 = arith.constant 0 : index
    %255 = vector.load %arg10[%c0_114, %c0_115] : memref<32x128xf32, #tpu.memory_space<vmem>>, vector<32x128xf32>
    %cst_116 = arith.constant dense<0.000000e+00> : vector<1x128xf32>
    %256 = tpu.matmul %254, %255, %cst_116 {dimension_numbers = #tpu.dot_dimension_numbers<[1], [0], [0], [1], [0, 0, 1, 1], [], []>} : vector<1x32xf32>, vector<32x128xf32>, vector<1x128xf32> -> vector<1x128xf32>
    %c3 = arith.constant 3 : index
    %c0_117 = arith.constant 0 : index
    %257 = vector.load %arg3[%c3, %c0_117] : memref<18x128xf32, #tpu.memory_space<vmem>>, vector<1x128xf32>
    %258 = arith.addf %256, %257 : vector<1x128xf32>
    %cst_118 = arith.constant dense<0xFF800000> : vector<1xf32>
    %259 = vector.multi_reduction <maximumf>, %258, %cst_118 [1] : vector<1x128xf32> to vector<1xf32>
    %260 = vector.shape_cast %259 : vector<1xf32> to vector<1x1xf32>
    %261 = vector.broadcast %260 : vector<1x1xf32> to vector<1x128xf32>
    %262 = arith.subf %258, %261 : vector<1x128xf32>
    %263 = math.exp %262 : vector<1x128xf32>
    %cst_119 = arith.constant dense<0.000000e+00> : vector<1xf32>
    %264 = vector.multi_reduction <add>, %263, %cst_119 [1] : vector<1x128xf32> to vector<1xf32>
    %265 = vector.shape_cast %264 : vector<1xf32> to vector<1x1xf32>
    %266 = vector.broadcast %265 : vector<1x1xf32> to vector<1x128xf32>
    %267 = arith.divf %263, %266 : vector<1x128xf32>
    %c0_120 = arith.constant 0 : index
    %c0_121 = arith.constant 0 : index
    %c0_122 = arith.constant 0 : index
    %268 = vector.load %arg11[%c0_120, %c0_121, %c0_122] : memref<1x1x128xf32, #tpu.memory_space<vmem>>, vector<1x1x128xf32>
    %269 = vector.shape_cast %268 : vector<1x1x128xf32> to vector<1x128xf32>
    %270 = vector.shape_cast %267 : vector<1x128xf32> to vector<1x1x128xf32>
    tpu.vector_store %arg11[%c0_120, %c0_121, %c0_122], %270 {strides = array<i32>} : memref<1x1x128xf32, #tpu.memory_space<vmem>>, vector<1x1x128xf32>,
    return
  }
  func.func @transform_0(%arg0: i32) -> (i32, i32, i32) {
    %c0_i32 = arith.constant 0 : i32
    %c0_i32_0 = arith.constant 0 : i32
    %c0_i32_1 = arith.constant 0 : i32
    return %arg0, %c0_i32, %c0_i32_0 : i32, i32, i32
  }
  func.func @transform_1(%arg0: i32) -> (i32, i32, i32) {
    %c0_i32 = arith.constant 0 : i32
    %c0_i32_0 = arith.constant 0 : i32
    %c0_i32_1 = arith.constant 0 : i32
    return %arg0, %c0_i32, %c0_i32_0 : i32, i32, i32
  }
  func.func @transform_2(%arg0: i32) -> (i32, i32) {
    %c0_i32 = arith.constant 0 : i32
    %c0_i32_0 = arith.constant 0 : i32
    %c0_i32_1 = arith.constant 0 : i32
    return %c0_i32, %c0_i32_0 : i32, i32
  }
  func.func @transform_3(%arg0: i32) -> (i32, i32, i32, i32) {
    %c0_i32 = arith.constant 0 : i32
    %c0_i32_0 = arith.constant 0 : i32
    %c0_i32_1 = arith.constant 0 : i32
    %c0_i32_2 = arith.constant 0 : i32
    %c0_i32_3 = arith.constant 0 : i32
    return %c0_i32, %c0_i32_0, %c0_i32_1, %c0_i32_2 : i32, i32, i32, i32
  }
  func.func @transform_4(%arg0: i32) -> (i32, i32, i32, i32) {
    %c0_i32 = arith.constant 0 : i32
    %c0_i32_0 = arith.constant 0 : i32
    %c0_i32_1 = arith.constant 0 : i32
    %c0_i32_2 = arith.constant 0 : i32
    %c0_i32_3 = arith.constant 0 : i32
    return %c0_i32, %c0_i32_0, %c0_i32_1, %c0_i32_2 : i32, i32, i32, i32
  }
  func.func @transform_5(%arg0: i32) -> (i32, i32, i32, i32) {
    %c0_i32 = arith.constant 0 : i32
    %c0_i32_0 = arith.constant 0 : i32
    %c0_i32_1 = arith.constant 0 : i32
    %c0_i32_2 = arith.constant 0 : i32
    %c0_i32_3 = arith.constant 0 : i32
    return %c0_i32, %c0_i32_0, %c0_i32_1, %c0_i32_2 : i32, i32, i32, i32
  }
  func.func @transform_6(%arg0: i32) -> (i32, i32, i32) {
    %c0_i32 = arith.constant 0 : i32
    %c0_i32_0 = arith.constant 0 : i32
    %c0_i32_1 = arith.constant 0 : i32
    %c0_i32_2 = arith.constant 0 : i32
    return %c0_i32, %c0_i32_0, %c0_i32_1 : i32, i32, i32
  }
  func.func @transform_7(%arg0: i32) -> (i32, i32, i32) {
    %c0_i32 = arith.constant 0 : i32
    %c0_i32_0 = arith.constant 0 : i32
    %c0_i32_1 = arith.constant 0 : i32
    %c0_i32_2 = arith.constant 0 : i32
    return %c0_i32, %c0_i32_0, %c0_i32_1 : i32, i32, i32
  }
  func.func @transform_8(%arg0: i32) -> (i32, i32) {
    %c0_i32 = arith.constant 0 : i32
    %c0_i32_0 = arith.constant 0 : i32
    %c0_i32_1 = arith.constant 0 : i32
    return %c0_i32, %c0_i32_0 : i32, i32
  }
  func.func @transform_9(%arg0: i32) -> (i32, i32) {
    %c0_i32 = arith.constant 0 : i32
    %c0_i32_0 = arith.constant 0 : i32
    %c0_i32_1 = arith.constant 0 : i32
    return %c0_i32, %c0_i32_0 : i32, i32
  }
  func.func @transform_10(%arg0: i32) -> (i32, i32, i32) {
    %c0_i32 = arith.constant 0 : i32
    %c0_i32_0 = arith.constant 0 : i32
    %c0_i32_1 = arith.constant 0 : i32
    return %arg0, %c0_i32, %c0_i32_0 : i32, i32, i32
  }
}

</mosaic_0001>

<llo_original>
// kernel: predictor_predict.1
$region0: #{predictor_predict.1}
  #allocation0 [shape = 'u32[]', space=smem, size = 0x4, offset = 0x4, fixed_abs, tag = 'smem constant byte address 0x4 - core index']
  #allocation1 [shape = 'u32[72,128]{1,0:T(1,128)}', space=vmem, size = 0x9000, scoped, tag = 'internal scratch']
  %s0 = inlined_call_operand.vmem [shape: f32[2,8,32], index: 0, kind: input, shape index: {}]
  %s1 = inlined_call_operand.vmem [shape: f32[2,1,8], index: 1, kind: input, shape index: {}]
  %s2 = inlined_call_operand.vmem [shape: f32[18,128], index: 2, kind: input, shape index: {}]
  %s3 = inlined_call_operand.vmem [shape: f32[2,4,32,24], index: 3, kind: input, shape index: {}]
  %s4 = inlined_call_operand.vmem [shape: f32[2,4,1,24], index: 4, kind: input, shape index: {}]
  %s5 = inlined_call_operand.vmem [shape: f32[2,4,8,32], index: 5, kind: input, shape index: {}]
  %s6 = inlined_call_operand.vmem [shape: f32[2,32,64], index: 6, kind: input, shape index: {}]
  %s7 = inlined_call_operand.vmem [shape: f32[2,64,32], index: 7, kind: input, shape index: {}]
  %s8 = inlined_call_operand.vmem [shape: f32[32,32], index: 8, kind: input, shape index: {}]
  %s9 = inlined_call_operand.vmem [shape: f32[32,128], index: 9, kind: input, shape index: {}]
  %s10 = inlined_call_operand.vmem [shape: f32[2,1,128], index: 10, kind: output, shape index: {}]
  %s11 = sld [smem:[#allocation0]]
  $region73: #{predictor_predict.1} parent=0
    _
  %s13 = ssub.s32 1, %s11
  %s14 = scalar_select 0, %s13, %s11
  loop: start=0, step=1, limit=4
  $region2: #{predictor_predict.1} parent=0 // loop_pre_header
    _
  $region3: #{predictor_predict.1} parent=0 // loop_header
    %s16 = sphi 0, %s20
    %p17 = scmp.ge.s32.totalorder %s16, 4
    %s26 = sphi 0, %s28
    %s29 = sphi 0, %s26
    %s30 = sphi 0, %s29
    %s46 = sphi 0, %s30
    %s52 = sphi 0, %s54
    %s55 = sphi 0, %s52
    %s56 = sphi 0, %s55
    %s72 = sphi 0, %s56
    %s76 = sphi 0, %s76
    %s78 = sphi 0, %s76
    %s79 = sphi 0, %s78
    %s93 = sphi 0, %s79
    %s97 = sphi 0, %s97
    %s99 = sphi 0, %s97
    %s100 = sphi 0, %s99
    %s114 = sphi 0, %s100
    %s118 = sphi 0, %s118
    %s120 = sphi 0, %s118
    %s121 = sphi 0, %s120
    %s135 = sphi 0, %s121
    %s139 = sphi 0, %s139
    %s141 = sphi 0, %s139
    %s142 = sphi 0, %s141
    %s156 = sphi 0, %s142
    %s160 = sphi 0, %s160
    %s162 = sphi 0, %s160
    %s163 = sphi 0, %s162
    %s177 = sphi 0, %s163
    %s181 = sphi 0, %s181
    %s183 = sphi 0, %s181
    %s184 = sphi 0, %s183
    %s198 = sphi 0, %s184
    %s202 = sphi 0, %s202
    %s204 = sphi 0, %s202
    %s205 = sphi 0, %s204
    %s219 = sphi 0, %s205
    %s223 = sphi 0, %s223
    %s225 = sphi 0, %s223
    %s226 = sphi 0, %s225
    %s240 = sphi 0, %s226
    %s246 = sphi 0, %s248
    %s249 = sphi 0, %s246
    %s250 = sphi 0, %s249
    %s266 = sphi 0, %s250
  $region4: #{predictor_predict.1} parent=0 // loop_header_branch
    %19 = sbr.rel (%p17) target = $region8
  $region5: #{predictor_predict.1} parent=0 // loop_body
    %s21 = ssub.s32 %s16, 1
    %s22 = ssub.s32 %s16, 2
    %s23 = sadd.s32 %s16, 1
    %s24 = ssub.s32 %s16, %s23
    %p25 = scmp.eq.s32.totalorder %s24, 0
    %s27 = sadd.s32 %s26, 1
    %s28 = scalar_select %p25, %s26, %s27
    %p31 = pneg %p25
    %p32 = scmp.eq.s32.totalorder %s16, 1
    %p33 = por %p31, %p32
    %p34 = scmp.ne.s32.totalorder %s26, %s29
    %p35 = scmp.eq.s32.totalorder %s16, 0
    %p36 = por %p34, %p35
    %p37 = scmp.ne.s32.totalorder %s26, %s29
    %p38 = scmp.eq.s32.totalorder %s21, 1
    %p39 = por %p37, %p38
    %p40 = scmp.ne.s32.totalorder %s29, %s30
    %p41 = scmp.eq.s32.totalorder %s21, 0
    %p42 = por %p40, %p41
    %p43 = scmp.ne.s32.totalorder %s29, %s30
    %p44 = scmp.eq.s32.totalorder %s22, 1
    %p45 = por %p43, %p44
    %p47 = scmp.ne.s32.totalorder %s30, %s46
    %p48 = scmp.eq.s32.totalorder %s22, 0
    %p49 = por %p47, %p48
    %s50 = ssub.s32 %s16, %s23
    %p51 = scmp.eq.s32.totalorder %s50, 0
    %s53 = sadd.s32 %s52, 1
    %s54 = scalar_select %p51, %s52, %s53
    %p57 = pneg %p51
    %p58 = scmp.eq.s32.totalorder %s16, 1
    %p59 = por %p57, %p58
    %p60 = scmp.ne.s32.totalorder %s52, %s55
    %p61 = scmp.eq.s32.totalorder %s16, 0
    %p62 = por %p60, %p61
    %p63 = scmp.ne.s32.totalorder %s52, %s55
    %p64 = scmp.eq.s32.totalorder %s21, 1
    %p65 = por %p63, %p64
    %p66 = scmp.ne.s32.totalorder %s55, %s56
    %p67 = scmp.eq.s32.totalorder %s21, 0
    %p68 = por %p66, %p67
    %p69 = scmp.ne.s32.totalorder %s55, %s56
    %p70 = scmp.eq.s32.totalorder %s22, 1
    %p71 = por %p69, %p70
    %p73 = scmp.ne.s32.totalorder %s56, %s72
    %p74 = scmp.eq.s32.totalorder %s22, 0
    %p75 = por %p73, %p74
    %s77 = sadd.s32 %s76, 1
    %p80 = scmp.eq.s32.totalorder %s16, 1
    %p81 = scmp.ne.s32.totalorder %s76, %s78
    %p82 = scmp.eq.s32.totalorder %s16, 0
    %p83 = por %p81, %p82
    %p84 = scmp.ne.s32.totalorder %s76, %s78
    %p85 = scmp.eq.s32.totalorder %s21, 1
    %p86 = por %p84, %p85
    %p87 = scmp.ne.s32.totalorder %s78, %s79
    %p88 = scmp.eq.s32.totalorder %s21, 0
    %p89 = por %p87, %p88
    %p90 = scmp.ne.s32.totalorder %s78, %s79
    %p91 = scmp.eq.s32.totalorder %s22, 1
    %p92 = por %p90, %p91
    %p94 = scmp.ne.s32.totalorder %s79, %s93
    %p95 = scmp.eq.s32.totalorder %s22, 0
    %p96 = por %p94, %p95
    %s98 = sadd.s32 %s97, 1
    %p101 = scmp.eq.s32.totalorder %s16, 1
    %p102 = scmp.ne.s32.totalorder %s97, %s99
    %p103 = scmp.eq.s32.totalorder %s16, 0
    %p104 = por %p102, %p103
    %p105 = scmp.ne.s32.totalorder %s97, %s99
    %p106 = scmp.eq.s32.totalorder %s21, 1
    %p107 = por %p105, %p106
    %p108 = scmp.ne.s32.totalorder %s99, %s100
    %p109 = scmp.eq.s32.totalorder %s21, 0
    %p110 = por %p108, %p109
    %p111 = scmp.ne.s32.totalorder %s99, %s100
    %p112 = scmp.eq.s32.totalorder %s22, 1
    %p113 = por %p111, %p112
    %p115 = scmp.ne.s32.totalorder %s100, %s114
    %p116 = scmp.eq.s32.totalorder %s22, 0
    %p117 = por %p115, %p116
    %s119 = sadd.s32 %s118, 1
    %p122 = scmp.eq.s32.totalorder %s16, 1
    %p123 = scmp.ne.s32.totalorder %s118, %s120
    %p124 = scmp.eq.s32.totalorder %s16, 0
    %p125 = por %p123, %p124
    %p126 = scmp.ne.s32.totalorder %s118, %s120
    %p127 = scmp.eq.s32.totalorder %s21, 1
    %p128 = por %p126, %p127
    %p129 = scmp.ne.s32.totalorder %s120, %s121
    %p130 = scmp.eq.s32.totalorder %s21, 0
    %p131 = por %p129, %p130
    %p132 = scmp.ne.s32.totalorder %s120, %s121
    %p133 = scmp.eq.s32.totalorder %s22, 1
    %p134 = por %p132, %p133
    %p136 = scmp.ne.s32.totalorder %s121, %s135
    %p137 = scmp.eq.s32.totalorder %s22, 0
    %p138 = por %p136, %p137
    %s140 = sadd.s32 %s139, 1
    %p143 = scmp.eq.s32.totalorder %s16, 1
    %p144 = scmp.ne.s32.totalorder %s139, %s141
    %p145 = scmp.eq.s32.totalorder %s16, 0
    %p146 = por %p144, %p145
    %p147 = scmp.ne.s32.totalorder %s139, %s141
    %p148 = scmp.eq.s32.totalorder %s21, 1
    %p149 = por %p147, %p148
    %p150 = scmp.ne.s32.totalorder %s141, %s142
    %p151 = scmp.eq.s32.totalorder %s21, 0
    %p152 = por %p150, %p151
    %p153 = scmp.ne.s32.totalorder %s141, %s142
    %p154 = scmp.eq.s32.totalorder %s22, 1
    %p155 = por %p153, %p154
    %p157 = scmp.ne.s32.totalorder %s142, %s156
    %p158 = scmp.eq.s32.totalorder %s22, 0
    %p159 = por %p157, %p158
    %s161 = sadd.s32 %s160, 1
    %p164 = scmp.eq.s32.totalorder %s16, 1
    %p165 = scmp.ne.s32.totalorder %s160, %s162
    %p166 = scmp.eq.s32.totalorder %s16, 0
    %p167 = por %p165, %p166
    %p168 = scmp.ne.s32.totalorder %s160, %s162
    %p169 = scmp.eq.s32.totalorder %s21, 1
    %p170 = por %p168, %p169
    %p171 = scmp.ne.s32.totalorder %s162, %s163
    %p172 = scmp.eq.s32.totalorder %s21, 0
    %p173 = por %p171, %p172
    %p174 = scmp.ne.s32.totalorder %s162, %s163
    %p175 = scmp.eq.s32.totalorder %s22, 1
    %p176 = por %p174, %p175
    %p178 = scmp.ne.s32.totalorder %s163, %s177
    %p179 = scmp.eq.s32.totalorder %s22, 0
    %p180 = por %p178, %p179
    %s182 = sadd.s32 %s181, 1
    %p185 = scmp.eq.s32.totalorder %s16, 1
    %p186 = scmp.ne.s32.totalorder %s181, %s183
    %p187 = scmp.eq.s32.totalorder %s16, 0
    %p188 = por %p186, %p187
    %p189 = scmp.ne.s32.totalorder %s181, %s183
    %p190 = scmp.eq.s32.totalorder %s21, 1
    %p191 = por %p189, %p190
    %p192 = scmp.ne.s32.totalorder %s183, %s184
    %p193 = scmp.eq.s32.totalorder %s21, 0
    %p194 = por %p192, %p193
    %p195 = scmp.ne.s32.totalorder %s183, %s184
    %p196 = scmp.eq.s32.totalorder %s22, 1
    %p197 = por %p195, %p196
    %p199 = scmp.ne.s32.totalorder %s184, %s198
    %p200 = scmp.eq.s32.totalorder %s22, 0
    %p201 = por %p199, %p200
    %s203 = sadd.s32 %s202, 1
    %p206 = scmp.eq.s32.totalorder %s16, 1
    %p207 = scmp.ne.s32.totalorder %s202, %s204
    %p208 = scmp.eq.s32.totalorder %s16, 0
    %p209 = por %p207, %p208
    %p210 = scmp.ne.s32.totalorder %s202, %s204
    %p211 = scmp.eq.s32.totalorder %s21, 1
    %p212 = por %p210, %p211
    %p213 = scmp.ne.s32.totalorder %s204, %s205
    %p214 = scmp.eq.s32.totalorder %s21, 0
    %p215 = por %p213, %p214
    %p216 = scmp.ne.s32.totalorder %s204, %s205
    %p217 = scmp.eq.s32.totalorder %s22, 1
    %p218 = por %p216, %p217
    %p220 = scmp.ne.s32.totalorder %s205, %s219
    %p221 = scmp.eq.s32.totalorder %s22, 0
    %p222 = por %p220, %p221
    %s224 = sadd.s32 %s223, 1
    %p227 = scmp.eq.s32.totalorder %s16, 1
    %p228 = scmp.ne.s32.totalorder %s223, %s225
    %p229 = scmp.eq.s32.totalorder %s16, 0
    %p230 = por %p228, %p229
    %p231 = scmp.ne.s32.totalorder %s223, %s225
    %p232 = scmp.eq.s32.totalorder %s21, 1
    %p233 = por %p231, %p232
    %p234 = scmp.ne.s32.totalorder %s225, %s226
    %p235 = scmp.eq.s32.totalorder %s21, 0
    %p236 = por %p234, %p235
    %p237 = scmp.ne.s32.totalorder %s225, %s226
    %p238 = scmp.eq.s32.totalorder %s22, 1
    %p239 = por %p237, %p238
    %p241 = scmp.ne.s32.totalorder %s226, %s240
    %p242 = scmp.eq.s32.totalorder %s22, 0
    %p243 = por %p241, %p242
    %s244 = ssub.s32 %s16, %s23
    %p245 = scmp.eq.s32.totalorder %s244, 0
    %s247 = sadd.s32 %s246, 1
    %s248 = scalar_select %p245, %s246, %s247
    %p251 = pneg %p245
    %p252 = scmp.eq.s32.totalorder %s16, 1
    %p253 = por %p251, %p252
    %p254 = scmp.ne.s32.totalorder %s246, %s249
    %p255 = scmp.eq.s32.totalorder %s16, 0
    %p256 = por %p254, %p255
    %p257 = scmp.ne.s32.totalorder %s246, %s249
    %p258 = scmp.eq.s32.totalorder %s21, 1
    %p259 = por %p257, %p258
    %p260 = scmp.ne.s32.totalorder %s249, %s250
    %p261 = scmp.eq.s32.totalorder %s21, 0
    %p262 = por %p260, %p261
    %p263 = scmp.ne.s32.totalorder %s249, %s250
    %p264 = scmp.eq.s32.totalorder %s22, 1
    %p265 = por %p263, %p264
    %p267 = scmp.ne.s32.totalorder %s250, %s266
    %p268 = scmp.eq.s32.totalorder %s22, 0
    %p269 = por %p267, %p268
    %p270 = scmp.le.s32.totalorder 1, %s16
    %p271 = scmp.lt.s32.totalorder %s16, 3
    %p272 = pnand %p270, %p271
    %p273 = pneg %p272
    // Predicated region
    $region9: #{predictor_predict.1} parent=5 // pred_check
      _
    $region10: #{predictor_predict.1} parent=5 // pred_check_branch
      %275 = sbr.rel (%p272) target = $region12
    $region11: #{predictor_predict.1} parent=5 // pred_region
      %s276 = ssub.s32 %s16, 1
      // Predicated region
      $region13: #{predictor_predict.1} parent=11 // pred_check
        %p277 = pneg %p89
      $region14: #{predictor_predict.1} parent=11 // pred_check_branch
        %279 = sbr.rel (%p277) target = $region16
      $region15: #{predictor_predict.1} parent=11 // pred_region
        _
      $region16: #{predictor_predict.1} parent=11 // pred_fallthru
        _
      // Predicated region
      $region17: #{predictor_predict.1} parent=11 // pred_check
        %p280 = pneg %p110
      $region18: #{predictor_predict.1} parent=11 // pred_check_branch
        %282 = sbr.rel (%p280) target = $region20
      $region19: #{predictor_predict.1} parent=11 // pred_region
        _
      $region20: #{predictor_predict.1} parent=11 // pred_fallthru
        _
      // Predicated region
      $region21: #{predictor_predict.1} parent=11 // pred_check
        %p283 = pneg %p131
      $region22: #{predictor_predict.1} parent=11 // pred_check_branch
        %285 = sbr.rel (%p283) target = $region24
      $region23: #{predictor_predict.1} parent=11 // pred_region
        _
      $region24: #{predictor_predict.1} parent=11 // pred_fallthru
        _
      // Predicated region
      $region25: #{predictor_predict.1} parent=11 // pred_check
        %p286 = pneg %p152
      $region26: #{predictor_predict.1} parent=11 // pred_check_branch
        %288 = sbr.rel (%p286) target = $region28
      $region27: #{predictor_predict.1} parent=11 // pred_region
        _
      $region28: #{predictor_predict.1} parent=11 // pred_fallthru
        _
      // Predicated region
      $region29: #{predictor_predict.1} parent=11 // pred_check
        %p289 = pneg %p173
      $region30: #{predictor_predict.1} parent=11 // pred_check_branch
        %291 = sbr.rel (%p289) target = $region32
      $region31: #{predictor_predict.1} parent=11 // pred_region
        _
      $region32: #{predictor_predict.1} parent=11 // pred_fallthru
        _
      // Predicated region
      $region33: #{predictor_predict.1} parent=11 // pred_check
        %p292 = pneg %p194
      $region34: #{predictor_predict.1} parent=11 // pred_check_branch
        %294 = sbr.rel (%p292) target = $region36
      $region35: #{predictor_predict.1} parent=11 // pred_region
        _
      $region36: #{predictor_predict.1} parent=11 // pred_fallthru
        _
      // Predicated region
      $region37: #{predictor_predict.1} parent=11 // pred_check
        %p295 = pneg %p215
      $region38: #{predictor_predict.1} parent=11 // pred_check_branch
        %297 = sbr.rel (%p295) target = $region40
      $region39: #{predictor_predict.1} parent=11 // pred_region
        _
      $region40: #{predictor_predict.1} parent=11 // pred_fallthru
        _
      // Predicated region
      $region41: #{predictor_predict.1} parent=11 // pred_check
        %p298 = pneg %p236
      $region42: #{predictor_predict.1} parent=11 // pred_check_branch
        %300 = sbr.rel (%p298) target = $region44
      $region43: #{predictor_predict.1} parent=11 // pred_region
        _
      $region44: #{predictor_predict.1} parent=11 // pred_fallthru
        _
    $region12: #{predictor_predict.1} parent=5 // pred_fallthru
      _
    %p301 = scmp.lt.s32.totalorder %s16, 2
    // Predicated region
    $region45: #{predictor_predict.1} parent=5 // pred_check
      %p302 = pneg %p301
    $region46: #{predictor_predict.1} parent=5 // pred_check_branch
      %304 = sbr.rel (%p302) target = $region48
    $region47: #{predictor_predict.1} parent=5 // pred_region
      // Predicated region
      $region49: #{predictor_predict.1} parent=47 // pred_check
        %p305 = pneg %p36
      $region50: #{predictor_predict.1} parent=47 // pred_check_branch
        %307 = sbr.rel (%p305) target = $region52
      $region51: #{predictor_predict.1} parent=47 // pred_region
        %p308 = scmp.lt.s32.totalorder %s16, 1
        %s309 = scalar_select %p308, %s16, 1
        %s310 = smul.addr %s309, 8
        %s311 = scalar_lea.vmem %s0, %s310
      $region52: #{predictor_predict.1} parent=47 // pred_fallthru
        _
      // Predicated region
      $region53: #{predictor_predict.1} parent=47 // pred_check
        %p312 = pneg %p62
      $region54: #{predictor_predict.1} parent=47 // pred_check_branch
        %314 = sbr.rel (%p312) target = $region56
      $region55: #{predictor_predict.1} parent=47 // pred_region
        %p315 = scmp.lt.s32.totalorder %s16, 1
        %s316 = scalar_select %p315, %s16, 1
        %s317 = scalar_lea.vmem %s1, %s316
      $region56: #{predictor_predict.1} parent=47 // pred_fallthru
        _
    $region48: #{predictor_predict.1} parent=5 // pred_fallthru
      _
    %p318 = scmp.le.s32.totalorder 1, %s16
    %p319 = scmp.lt.s32.totalorder %s16, 3
    %p320 = pnand %p318, %p319
    %p321 = pneg %p320
    // Predicated region
    $region57: #{predictor_predict.1} parent=5 // pred_check
      _
    $region58: #{predictor_predict.1} parent=5 // pred_check_branch
      %323 = sbr.rel (%p320) target = $region60
    $region59: #{predictor_predict.1} parent=5 // pred_region
      %s324 = ssub.s32 %s16, 1
      %p325 = scmp.lt.s32.totalorder %s21, 1
      %s326 = scalar_select %p325, %s21, 1
      %s327 = smul.addr %s326, 8
      %s328 = scalar_lea.vmem %s0, %s327
      %p329 = pneg %p42
      %p330 = pneg %p39
      %p331 = scmp.lt.s32.totalorder %s21, 1
      %s332 = scalar_select %p331, %s21, 1
      %s333 = scalar_lea.vmem %s1, %s332
      %p334 = pneg %p68
      %p335 = pneg %p65
      %p336 = pneg %p89
      %p337 = pneg %p86
      %p338 = pneg %p110
      %p339 = pneg %p107
      %p340 = pneg %p131
      %p341 = pneg %p128
      %p342 = pneg %p152
      %p343 = pneg %p149
      %p344 = pneg %p173
      %p345 = pneg %p170
      %p346 = pneg %p194
      %p347 = pneg %p191
      %p348 = pneg %p215
      %p349 = pneg %p212
      %p350 = pneg %p236
      %p351 = pneg %p233
      %p352 = pneg %p262
      %p353 = pneg %p259
      %p354 = scmp.lt.s32.totalorder %s21, 1
      %s355 = scalar_select %p354, %s21, 1
      %s356 = scalar_lea.vmem %s10, %s355
      %p357 = scmp.lt.s32.totalorder %s21, 1
      %s358 = scalar_select %p357, %s21, 1
      %s359 = smul.addr %s358, 8
      %s360 = scalar_lea.vmem %s0, %s359
      %p361 = scmp.lt.s32.totalorder %s21, 1
      %s362 = scalar_select %p361, %s21, 1
      %s363 = scalar_lea.vmem %s1, %s362
      %p364 = scmp.lt.s32.totalorder %s21, 1
      %s365 = scalar_select %p364, %s21, 1
      %s366 = scalar_lea.vmem %s10, %s365
      %v367 = vld [vmem:[%s360] sm:$0xff]
      %v368 = vld [vmem:[%s2] sm:$0x1]
      %v369 = vld [vmem:[%s2 + $0x1] sm:$0x1]
      %vm370 = vcmask 261120
      %v371 = vsel %vm370, %v367, 0.0
      %372 = vadd.xlane.f32.xlu0 %v371
      %v373 = vpop.xlane.xlu0 %372
      %v374 = vrcp.pop 32.0
      %v375 = vmul.f32 32.0, %v374
      %v376 = vsub.f32 1.0, %v375
      %v377 = vmul.f32 %v374, %v376
      %v378 = vadd.f32 %v374, %v377
      %vm379 = vweird.f32 %v374
      %v380 = vsel %vm379, %v374, %v378
      %v381 = vmul.f32 %v373, %v380
      %v382 = vsub.f32 %v367, %v381
      %v383 = vmul.f32 %v382, %v382
      %v384 = vsel %vm370, %v383, 0.0
      %385 = vadd.xlane.f32.xlu0 %v384
      %v386 = vpop.xlane.xlu0 %385
      %v387 = vmul.f32 %v386, %v380
      %v388 = vadd.f32 %v387, 1e-12
      %v389 = vrsqrt.pop %v388
      %v390 = vmul.f32 %v389, %v388
      %v391 = vmul.f32 %v390, %v389
      %v392 = vmul.f32 0.5, %v391
      %v393 = vsub.f32 1.5, %v392
      %v394 = vmul.f32 %v389, %v393
      %vm395 = vweird.f32 %v388
      %vm396 = vweird.f32 %v389
      %vm397 = vmor %vm395, %vm396
      %v398 = vsel %vm397, %v389, %v394
      %v399 = vmul.f32 %v382, %v398
      %v400 = vperm.slane %v368, 0
      %v401 = vmul.f32 %v399, %v400
      %v402 = vperm.slane %v369, 0
      %v403 = vadd.f32 %v401, %v402
      %v404 = vld [vmem:[%s363] sm:$0x1]
      %v405 = vld [vmem:[%s3] sm:$0xff]
      %v406 = vld [vmem:[%s3 + $0x8] sm:$0xff]
      %v407 = vld [vmem:[%s3 + $0x10] sm:$0xff]
      %v408 = vld [vmem:[%s3 + $0x18] sm:$0xff]
      %v409 = vld [vmem:[%s3 + $0x20] sm:$0xff]
      %v410 = vld [vmem:[%s3 + $0x28] sm:$0xff]
      %v411 = vld [vmem:[%s3 + $0x30] sm:$0xff]
      %v412 = vld [vmem:[%s3 + $0x38] sm:$0xff]
      %v413 = vld [vmem:[%s3 + $0x40] sm:$0xff]
      %v414 = vld [vmem:[%s3 + $0x48] sm:$0xff]
      %v415 = vld [vmem:[%s3 + $0x50] sm:$0xff]
      %v416 = vld [vmem:[%s3 + $0x58] sm:$0xff]
      %v417 = vld [vmem:[%s3 + $0x60] sm:$0xff]
      %v418 = vld [vmem:[%s3 + $0x68] sm:$0xff]
      %v419 = vld [vmem:[%s3 + $0x70] sm:$0xff]
      %v420 = vld [vmem:[%s3 + $0x78] sm:$0xff]
      %v421 = vld [vmem:[%s4] sm:$0x1]
      %v422 = vld [vmem:[%s4 + $0x1] sm:$0x1]
      %v423 = vld [vmem:[%s4 + $0x2] sm:$0x1]
      %v424 = vld [vmem:[%s4 + $0x3] sm:$0x1]
      %v429 = vperm.slane %v421, 0
      %v430 = vperm.slane %v422, 0
      %v431 = vperm.slane %v423, 0
      %v432 = vperm.slane %v424, 0
      %v438 = vsel %vm370, %v403, 0
      %440 = vmatpush.msra.mxu0 0.0
      %441 = vmatpush.msra.mxu0 0.0
      %442 = vmatpush.msra.mxu0 0.0
      %443 = vmatpush.msra.mxu0 0.0
      %444 = vmatpush.msra.mxu0 0.0
      %445 = vmatpush.msra.mxu0 0.0
      %446 = vmatpush.msra.mxu0 0.0
      %447 = vmatpush.msra.mxu0 0.0
      %448 = vmatpush.msra.mxu0 0.0
      %449 = vmatpush.msra.mxu0 0.0
      %450 = vmatpush.msra.mxu0 0.0
      %451 = vmatpush.msra.mxu0 0.0
      %452 = vmatpush.msra.mxu0 %v408
      %453 = vmatpush.msra.mxu0 %v407
      %454 = vmatpush.msra.mxu0 %v406
      %455 = vmatpush.msra.mxu0 %v405
      %456 = vmatmul.f32.gmra.mxu0 %v438
      %v457 = vpop.f32.mrf.mxu0
      %v458 = vadd.f32 %v429, %v457
      %459 = vdwg.mxu0
      %460 = vmatpush.msra.mxu0 0.0
      %461 = vmatpush.msra.mxu0 0.0
      %462 = vmatpush.msra.mxu0 0.0
      %463 = vmatpush.msra.mxu0 0.0
      %464 = vmatpush.msra.mxu0 0.0
      %465 = vmatpush.msra.mxu0 0.0
      %466 = vmatpush.msra.mxu0 0.0
      %467 = vmatpush.msra.mxu0 0.0
      %468 = vmatpush.msra.mxu0 0.0
      %469 = vmatpush.msra.mxu0 0.0
      %470 = vmatpush.msra.mxu0 0.0
      %471 = vmatpush.msra.mxu0 0.0
      %472 = vmatpush.msra.mxu0 %v412
      %473 = vmatpush.msra.mxu0 %v411
      %474 = vmatpush.msra.mxu0 %v410
      %475 = vmatpush.msra.mxu0 %v409
      %476 = vmatmul.f32.gmra.mxu0 %v438
      %v477 = vpop.f32.mrf.mxu0
      %v478 = vadd.f32 %v430, %v477
      %479 = vdwg.mxu0
      %480 = vmatpush.msra.mxu0 0.0
      %481 = vmatpush.msra.mxu0 0.0
      %482 = vmatpush.msra.mxu0 0.0
      %483 = vmatpush.msra.mxu0 0.0
      %484 = vmatpush.msra.mxu0 0.0
      %485 = vmatpush.msra.mxu0 0.0
      %486 = vmatpush.msra.mxu0 0.0
      %487 = vmatpush.msra.mxu0 0.0
      %488 = vmatpush.msra.mxu0 0.0
      %489 = vmatpush.msra.mxu0 0.0
      %490 = vmatpush.msra.mxu0 0.0
      %491 = vmatpush.msra.mxu0 0.0
      %492 = vmatpush.msra.mxu0 %v416
      %493 = vmatpush.msra.mxu0 %v415
      %494 = vmatpush.msra.mxu0 %v414
      %495 = vmatpush.msra.mxu0 %v413
      %496 = vmatmul.f32.gmra.mxu0 %v438
      %v497 = vpop.f32.mrf.mxu0
      %v498 = vadd.f32 %v431, %v497
      %499 = vdwg.mxu0
      %500 = vmatpush.msra.mxu0 0.0
      %501 = vmatpush.msra.mxu0 0.0
      %502 = vmatpush.msra.mxu0 0.0
      %503 = vmatpush.msra.mxu0 0.0
      %504 = vmatpush.msra.mxu0 0.0
      %505 = vmatpush.msra.mxu0 0.0
      %506 = vmatpush.msra.mxu0 0.0
      %507 = vmatpush.msra.mxu0 0.0
      %508 = vmatpush.msra.mxu0 0.0
      %509 = vmatpush.msra.mxu0 0.0
      %510 = vmatpush.msra.mxu0 0.0
      %511 = vmatpush.msra.mxu0 0.0
      %512 = vmatpush.msra.mxu0 %v420
      %513 = vmatpush.msra.mxu0 %v419
      %514 = vmatpush.msra.mxu0 %v418
      %515 = vmatpush.msra.mxu0 %v417
      %516 = vmatmul.f32.gmra.mxu0 %v438
      %v517 = vpop.f32.mrf.mxu0
      %v518 = vadd.f32 %v432, %v517
      %519 = vdwg.mxu0
      %v520 = vmul.f32 %v458, 0.35355338
      %v521 = vmul.f32 %v478, 0.35355338
      %v522 = vmul.f32 %v498, 0.35355338
      %v523 = vmul.f32 %v518, 0.35355338
      %v525 = vperm.slane %v404, 0
      %528 = vrot.lane.b32.xlu0 %v458, 120
      %v529 = vpop.permute.xlu0 %528
      %vm530 = vcmask 64512
      %v532 = vsel %vm530, %v520, 0
      %v534 = vsel %vm530, %v529, 0
      %536 = vmatpush.xpose.msra.mxu0 0.0
      %537 = vmatpush.xpose.msra.mxu0 0.0
      %538 = vmatpush.xpose.msra.mxu0 0.0
      %539 = vmatpush.xpose.msra.mxu0 0.0
      %540 = vmatpush.xpose.msra.mxu0 0.0
      %541 = vmatpush.xpose.msra.mxu0 0.0
      %542 = vmatpush.xpose.msra.mxu0 0.0
      %543 = vmatpush.xpose.msra.mxu0 0.0
      %544 = vmatpush.xpose.msra.mxu0 0.0
      %545 = vmatpush.xpose.msra.mxu0 0.0
      %546 = vmatpush.xpose.msra.mxu0 0.0
      %547 = vmatpush.xpose.msra.mxu0 0.0
      %548 = vmatpush.xpose.msra.mxu0 0.0
      %549 = vmatpush.xpose.msra.mxu0 0.0
      %550 = vmatpush.xpose.msra.mxu0 0.0
      %551 = vmatpush.xpose.msra.mxu0 %v534
      %552 = vmatmul.f32.gmra.mxu0 %v532
      %v553 = vpop.f32.mrf.mxu0
      %v554 = vadd.f32 %v525, %v553
      %555 = vdwg.mxu0
      %557 = vrot.lane.b32.xlu0 %v478, 120
      %v558 = vpop.permute.xlu0 %557
      %v560 = vsel %vm530, %v521, 0
      %v562 = vsel %vm530, %v558, 0
      %564 = vmatpush.xpose.msra.mxu0 0.0
      %565 = vmatpush.xpose.msra.mxu0 0.0
      %566 = vmatpush.xpose.msra.mxu0 0.0
      %567 = vmatpush.xpose.msra.mxu0 0.0
      %568 = vmatpush.xpose.msra.mxu0 0.0
      %569 = vmatpush.xpose.msra.mxu0 0.0
      %570 = vmatpush.xpose.msra.mxu0 0.0
      %571 = vmatpush.xpose.msra.mxu0 0.0
      %572 = vmatpush.xpose.msra.mxu0 0.0
      %573 = vmatpush.xpose.msra.mxu0 0.0
      %574 = vmatpush.xpose.msra.mxu0 0.0
      %575 = vmatpush.xpose.msra.mxu0 0.0
      %576 = vmatpush.xpose.msra.mxu0 0.0
      %577 = vmatpush.xpose.msra.mxu0 0.0
      %578 = vmatpush.xpose.msra.mxu0 0.0
      %579 = vmatpush.xpose.msra.mxu0 %v562
      %580 = vmatmul.f32.gmra.mxu0 %v560
      %v581 = vpop.f32.mrf.mxu0
      %v582 = vadd.f32 %v525, %v581
      %583 = vdwg.mxu0
      %585 = vrot.lane.b32.xlu0 %v498, 120
      %v586 = vpop.permute.xlu0 %585
      %v588 = vsel %vm530, %v522, 0
      %v590 = vsel %vm530, %v586, 0
      %592 = vmatpush.xpose.msra.mxu0 0.0
      %593 = vmatpush.xpose.msra.mxu0 0.0
      %594 = vmatpush.xpose.msra.mxu0 0.0
      %595 = vmatpush.xpose.msra.mxu0 0.0
      %596 = vmatpush.xpose.msra.mxu0 0.0
      %597 = vmatpush.xpose.msra.mxu0 0.0
      %598 = vmatpush.xpose.msra.mxu0 0.0
      %599 = vmatpush.xpose.msra.mxu0 0.0
      %600 = vmatpush.xpose.msra.mxu0 0.0
      %601 = vmatpush.xpose.msra.mxu0 0.0
      %602 = vmatpush.xpose.msra.mxu0 0.0
      %603 = vmatpush.xpose.msra.mxu0 0.0
      %604 = vmatpush.xpose.msra.mxu0 0.0
      %605 = vmatpush.xpose.msra.mxu0 0.0
      %606 = vmatpush.xpose.msra.mxu0 0.0
      %607 = vmatpush.xpose.msra.mxu0 %v590
      %608 = vmatmul.f32.gmra.mxu0 %v588
      %v609 = vpop.f32.mrf.mxu0
      %v610 = vadd.f32 %v525, %v609
      %611 = vdwg.mxu0
      %613 = vrot.lane.b32.xlu0 %v518, 120
      %v614 = vpop.permute.xlu0 %613
      %v616 = vsel %vm530, %v523, 0
      %v618 = vsel %vm530, %v614, 0
      %620 = vmatpush.xpose.msra.mxu0 0.0
      %621 = vmatpush.xpose.msra.mxu0 0.0
      %622 = vmatpush.xpose.msra.mxu0 0.0
      %623 = vmatpush.xpose.msra.mxu0 0.0
      %624 = vmatpush.xpose.msra.mxu0 0.0
      %625 = vmatpush.xpose.msra.mxu0 0.0
      %626 = vmatpush.xpose.msra.mxu0 0.0
      %627 = vmatpush.xpose.msra.mxu0 0.0
      %628 = vmatpush.xpose.msra.mxu0 0.0
      %629 = vmatpush.xpose.msra.mxu0 0.0
      %630 = vmatpush.xpose.msra.mxu0 0.0
      %631 = vmatpush.xpose.msra.mxu0 0.0
      %632 = vmatpush.xpose.msra.mxu0 0.0
      %633 = vmatpush.xpose.msra.mxu0 0.0
      %634 = vmatpush.xpose.msra.mxu0 0.0
      %635 = vmatpush.xpose.msra.mxu0 %v618
      %636 = vmatmul.f32.gmra.mxu0 %v616
      %v637 = vpop.f32.mrf.mxu0
      %v638 = vadd.f32 %v525, %v637
      %639 = vdwg.mxu0
      %v640 = vsel %vm530, %v554, -inf
      %641 = vmax.xlane.f32.xlu0 %v640
      %v642 = vpop.xlane.xlu0 %641
      %v643 = vsel %vm530, %v582, -inf
      %644 = vmax.xlane.f32.xlu0 %v643
      %v645 = vpop.xlane.xlu0 %644
      %v646 = vsel %vm530, %v610, -inf
      %647 = vmax.xlane.f32.xlu0 %v646
      %v648 = vpop.xlane.xlu0 %647
      %v649 = vsel %vm530, %v638, -inf
      %650 = vmax.xlane.f32.xlu0 %v649
      %v651 = vpop.xlane.xlu0 %650
      %v652 = vsub.f32 %v554, %v642
      %v653 = vsub.f32 %v582, %v645
      %v654 = vsub.f32 %v610, %v648
      %v655 = vsub.f32 %v638, %v651
      %v656 = vmul.f32 %v652, 1.442695
      %v657 = vpow.pop %v656
      %v658 = vmul.f32 %v653, 1.442695
      %v659 = vpow.pop %v658
      %v660 = vmul.f32 %v654, 1.442695
      %v661 = vpow.pop %v660
      %v662 = vmul.f32 %v655, 1.442695
      %v663 = vpow.pop %v662
      %v664 = vsel %vm530, %v657, 0.0
      %665 = vadd.xlane.f32.xlu0 %v664
      %v666 = vpop.xlane.xlu0 %665
      %v667 = vsel %vm530, %v659, 0.0
      %668 = vadd.xlane.f32.xlu0 %v667
      %v669 = vpop.xlane.xlu0 %668
      %v670 = vsel %vm530, %v661, 0.0
      %671 = vadd.xlane.f32.xlu0 %v670
      %v672 = vpop.xlane.xlu0 %671
      %v673 = vsel %vm530, %v663, 0.0
      %674 = vadd.xlane.f32.xlu0 %v673
      %v675 = vpop.xlane.xlu0 %674
      %v676 = vrcp.pop %v666
      %v677 = vmul.f32 %v666, %v676
      %v678 = vsub.f32 1.0, %v677
      %v679 = vmul.f32 %v676, %v678
      %v680 = vadd.f32 %v676, %v679
      %vm681 = vweird.f32 %v666
      %vm682 = vweird.f32 %v676
      %vm683 = vmor %vm681, %vm682
      %v684 = vsel %vm683, %v676, %v680
      %v685 = vand.u32 2147483647, %v666
      %vm686 = vcmp.eq.f32.partialorder %v685, 8.507059e+37
      %v687 = vand.u32 %v666, 2147483648
      %v688 = vor.u32 1.1754944e-38, %v687
      %v689 = vsel %vm686, %v688, %v684
      %v690 = vmul.f32 %v657, %v689
      %v691 = vrcp.pop %v669
      %v692 = vmul.f32 %v669, %v691
      %v693 = vsub.f32 1.0, %v692
      %v694 = vmul.f32 %v691, %v693
      %v695 = vadd.f32 %v691, %v694
      %vm696 = vweird.f32 %v669
      %vm697 = vweird.f32 %v691
      %vm698 = vmor %vm696, %vm697
      %v699 = vsel %vm698, %v691, %v695
      %v700 = vand.u32 2147483647, %v669
      %vm701 = vcmp.eq.f32.partialorder %v700, 8.507059e+37
      %v702 = vand.u32 %v669, 2147483648
      %v703 = vor.u32 1.1754944e-38, %v702
      %v704 = vsel %vm701, %v703, %v699
      %v705 = vmul.f32 %v659, %v704
      %v706 = vrcp.pop %v672
      %v707 = vmul.f32 %v672, %v706
      %v708 = vsub.f32 1.0, %v707
      %v709 = vmul.f32 %v706, %v708
      %v710 = vadd.f32 %v706, %v709
      %vm711 = vweird.f32 %v672
      %vm712 = vweird.f32 %v706
      %vm713 = vmor %vm711, %vm712
      %v714 = vsel %vm713, %v706, %v710
      %v715 = vand.u32 2147483647, %v672
      %vm716 = vcmp.eq.f32.partialorder %v715, 8.507059e+37
      %v717 = vand.u32 %v672, 2147483648
      %v718 = vor.u32 1.1754944e-38, %v717
      %v719 = vsel %vm716, %v718, %v714
      %v720 = vmul.f32 %v661, %v719
      %v721 = vrcp.pop %v675
      %v722 = vmul.f32 %v675, %v721
      %v723 = vsub.f32 1.0, %v722
      %v724 = vmul.f32 %v721, %v723
      %v725 = vadd.f32 %v721, %v724
      %vm726 = vweird.f32 %v675
      %vm727 = vweird.f32 %v721
      %vm728 = vmor %vm726, %vm727
      %v729 = vsel %vm728, %v721, %v725
      %v730 = vand.u32 2147483647, %v675
      %vm731 = vcmp.eq.f32.partialorder %v730, 8.507059e+37
      %v732 = vand.u32 %v675, 2147483648
      %v733 = vor.u32 1.1754944e-38, %v732
      %v734 = vsel %vm731, %v733, %v729
      %v735 = vmul.f32 %v663, %v734
      %736 = vrot.lane.b32.xlu0 %v458, 112
      %v737 = vpop.permute.xlu0 %736
      %v740 = vsel %vm530, %v690, 0
      %742 = vmatpush.msra.mxu0 0.0
      %743 = vmatpush.msra.mxu0 0.0
      %744 = vmatpush.msra.mxu0 0.0
      %745 = vmatpush.msra.mxu0 0.0
      %746 = vmatpush.msra.mxu0 0.0
      %747 = vmatpush.msra.mxu0 0.0
      %748 = vmatpush.msra.mxu0 0.0
      %749 = vmatpush.msra.mxu0 0.0
      %750 = vmatpush.msra.mxu0 0.0
      %751 = vmatpush.msra.mxu0 0.0
      %752 = vmatpush.msra.mxu0 0.0
      %753 = vmatpush.msra.mxu0 0.0
      %754 = vmatpush.msra.mxu0 0.0
      %755 = vmatpush.msra.mxu0 0.0
      %756 = vmatpush.msra.mxu0 0.0
      %757 = vmatpush.msra.mxu0 %v737
      %758 = vmatmul.f32.gmra.mxu0 %v740
      %v759 = vpop.f32.mrf.mxu0
      %v760 = vadd.f32 0.0, %v759
      %761 = vdwg.mxu0
      %762 = vrot.lane.b32.xlu0 %v478, 112
      %v763 = vpop.permute.xlu0 %762
      %v766 = vsel %vm530, %v705, 0
      %768 = vmatpush.msra.mxu0 0.0
      %769 = vmatpush.msra.mxu0 0.0
      %770 = vmatpush.msra.mxu0 0.0
      %771 = vmatpush.msra.mxu0 0.0
      %772 = vmatpush.msra.mxu0 0.0
      %773 = vmatpush.msra.mxu0 0.0
      %774 = vmatpush.msra.mxu0 0.0
      %775 = vmatpush.msra.mxu0 0.0
      %776 = vmatpush.msra.mxu0 0.0
      %777 = vmatpush.msra.mxu0 0.0
      %778 = vmatpush.msra.mxu0 0.0
      %779 = vmatpush.msra.mxu0 0.0
      %780 = vmatpush.msra.mxu0 0.0
      %781 = vmatpush.msra.mxu0 0.0
      %782 = vmatpush.msra.mxu0 0.0
      %783 = vmatpush.msra.mxu0 %v763
      %784 = vmatmul.f32.gmra.mxu0 %v766
      %v785 = vpop.f32.mrf.mxu0
      %v786 = vadd.f32 0.0, %v785
      %787 = vdwg.mxu0
      %788 = vrot.lane.b32.xlu0 %v498, 112
      %v789 = vpop.permute.xlu0 %788
      %v792 = vsel %vm530, %v720, 0
      %794 = vmatpush.msra.mxu0 0.0
      %795 = vmatpush.msra.mxu0 0.0
      %796 = vmatpush.msra.mxu0 0.0
      %797 = vmatpush.msra.mxu0 0.0
      %798 = vmatpush.msra.mxu0 0.0
      %799 = vmatpush.msra.mxu0 0.0
      %800 = vmatpush.msra.mxu0 0.0
      %801 = vmatpush.msra.mxu0 0.0
      %802 = vmatpush.msra.mxu0 0.0
      %803 = vmatpush.msra.mxu0 0.0
      %804 = vmatpush.msra.mxu0 0.0
      %805 = vmatpush.msra.mxu0 0.0
      %806 = vmatpush.msra.mxu0 0.0
      %807 = vmatpush.msra.mxu0 0.0
      %808 = vmatpush.msra.mxu0 0.0
      %809 = vmatpush.msra.mxu0 %v789
      %810 = vmatmul.f32.gmra.mxu0 %v792
      %v811 = vpop.f32.mrf.mxu0
      %v812 = vadd.f32 0.0, %v811
      %813 = vdwg.mxu0
      %814 = vrot.lane.b32.xlu0 %v518, 112
      %v815 = vpop.permute.xlu0 %814
      %v818 = vsel %vm530, %v735, 0
      %820 = vmatpush.msra.mxu0 0.0
      %821 = vmatpush.msra.mxu0 0.0
      %822 = vmatpush.msra.mxu0 0.0
      %823 = vmatpush.msra.mxu0 0.0
      %824 = vmatpush.msra.mxu0 0.0
      %825 = vmatpush.msra.mxu0 0.0
      %826 = vmatpush.msra.mxu0 0.0
      %827 = vmatpush.msra.mxu0 0.0
      %828 = vmatpush.msra.mxu0 0.0
      %829 = vmatpush.msra.mxu0 0.0
      %830 = vmatpush.msra.mxu0 0.0
      %831 = vmatpush.msra.mxu0 0.0
      %832 = vmatpush.msra.mxu0 0.0
      %833 = vmatpush.msra.mxu0 0.0
      %834 = vmatpush.msra.mxu0 0.0
      %835 = vmatpush.msra.mxu0 %v815
      %836 = vmatmul.f32.gmra.mxu0 %v818
      %v837 = vpop.f32.mrf.mxu0
      %v838 = vadd.f32 0.0, %v837
      %839 = vdwg.mxu0
      %v840 = vld [vmem:[%s5] sm:$0xff]
      %v841 = vld [vmem:[%s5 + $0x8] sm:$0xff]
      %v842 = vld [vmem:[%s5 + $0x10] sm:$0xff]
      %v843 = vld [vmem:[%s5 + $0x18] sm:$0xff]
      %v845 = vsel %vm530, %v760, 0
      %847 = vmatpush.msra.mxu0 0.0
      %848 = vmatpush.msra.mxu0 0.0
      %849 = vmatpush.msra.mxu0 0.0
      %850 = vmatpush.msra.mxu0 0.0
      %851 = vmatpush.msra.mxu0 0.0
      %852 = vmatpush.msra.mxu0 0.0
      %853 = vmatpush.msra.mxu0 0.0
      %854 = vmatpush.msra.mxu0 0.0
      %855 = vmatpush.msra.mxu0 0.0
      %856 = vmatpush.msra.mxu0 0.0
      %857 = vmatpush.msra.mxu0 0.0
      %858 = vmatpush.msra.mxu0 0.0
      %859 = vmatpush.msra.mxu0 0.0
      %860 = vmatpush.msra.mxu0 0.0
      %861 = vmatpush.msra.mxu0 0.0
      %862 = vmatpush.msra.mxu0 %v840
      %863 = vmatmul.f32.gmra.mxu0 %v845
      %v864 = vpop.f32.mrf.mxu0
      %v865 = vadd.f32 0.0, %v864
      %866 = vdwg.mxu0
      %v868 = vsel %vm530, %v786, 0
      %870 = vmatpush.msra.mxu0 0.0
      %871 = vmatpush.msra.mxu0 0.0
      %872 = vmatpush.msra.mxu0 0.0
      %873 = vmatpush.msra.mxu0 0.0
      %874 = vmatpush.msra.mxu0 0.0
      %875 = vmatpush.msra.mxu0 0.0
      %876 = vmatpush.msra.mxu0 0.0
      %877 = vmatpush.msra.mxu0 0.0
      %878 = vmatpush.msra.mxu0 0.0
      %879 = vmatpush.msra.mxu0 0.0
      %880 = vmatpush.msra.mxu0 0.0
      %881 = vmatpush.msra.mxu0 0.0
      %882 = vmatpush.msra.mxu0 0.0
      %883 = vmatpush.msra.mxu0 0.0
      %884 = vmatpush.msra.mxu0 0.0
      %885 = vmatpush.msra.mxu0 %v841
      %886 = vmatmul.f32.gmra.mxu0 %v868
      %v887 = vpop.f32.mrf.mxu0
      %v888 = vadd.f32 0.0, %v887
      %889 = vdwg.mxu0
      %v891 = vsel %vm530, %v812, 0
      %893 = vmatpush.msra.mxu0 0.0
      %894 = vmatpush.msra.mxu0 0.0
      %895 = vmatpush.msra.mxu0 0.0
      %896 = vmatpush.msra.mxu0 0.0
      %897 = vmatpush.msra.mxu0 0.0
      %898 = vmatpush.msra.mxu0 0.0
      %899 = vmatpush.msra.mxu0 0.0
      %900 = vmatpush.msra.mxu0 0.0
      %901 = vmatpush.msra.mxu0 0.0
      %902 = vmatpush.msra.mxu0 0.0
      %903 = vmatpush.msra.mxu0 0.0
      %904 = vmatpush.msra.mxu0 0.0
      %905 = vmatpush.msra.mxu0 0.0
      %906 = vmatpush.msra.mxu0 0.0
      %907 = vmatpush.msra.mxu0 0.0
      %908 = vmatpush.msra.mxu0 %v842
      %909 = vmatmul.f32.gmra.mxu0 %v891
      %v910 = vpop.f32.mrf.mxu0
      %v911 = vadd.f32 0.0, %v910
      %912 = vdwg.mxu0
      %v914 = vsel %vm530, %v838, 0
      %916 = vmatpush.msra.mxu0 0.0
      %917 = vmatpush.msra.mxu0 0.0
      %918 = vmatpush.msra.mxu0 0.0
      %919 = vmatpush.msra.mxu0 0.0
      %920 = vmatpush.msra.mxu0 0.0
      %921 = vmatpush.msra.mxu0 0.0
      %922 = vmatpush.msra.mxu0 0.0
      %923 = vmatpush.msra.mxu0 0.0
      %924 = vmatpush.msra.mxu0 0.0
      %925 = vmatpush.msra.mxu0 0.0
      %926 = vmatpush.msra.mxu0 0.0
      %927 = vmatpush.msra.mxu0 0.0
      %928 = vmatpush.msra.mxu0 0.0
      %929 = vmatpush.msra.mxu0 0.0
      %930 = vmatpush.msra.mxu0 0.0
      %931 = vmatpush.msra.mxu0 %v843
      %932 = vmatmul.f32.gmra.mxu0 %v914
      %v933 = vpop.f32.mrf.mxu0
      %v934 = vadd.f32 0.0, %v933
      %935 = vdwg.mxu0
      %v936 = vsel %vm370, %v865, 0.0
      %v937 = vsel %vm370, %v888, 0.0
      %v938 = vadd.f32 %v936, %v937
      %v939 = vsel %vm370, %v911, 0.0
      %v940 = vadd.f32 %v938, %v939
      %v941 = vsel %vm370, %v934, 0.0
      %v942 = vadd.f32 %v940, %v941
      %v943 = vld [vmem:[%s2 + $0x4] sm:$0x1]
      %v944 = vperm.slane %v943, 0
      %v945 = vadd.f32 %v942, %v944
      %v946 = vadd.f32 %v403, %v945
      %v947 = vld [vmem:[%s2 + $0x5] sm:$0x1]
      %v948 = vld [vmem:[%s2 + $0x6] sm:$0x1]
      %v949 = vsel %vm370, %v946, 0.0
      %950 = vadd.xlane.f32.xlu0 %v949
      %v951 = vpop.xlane.xlu0 %950
      %v952 = vmul.f32 %v951, %v380
      %v953 = vsub.f32 %v946, %v952
      %v954 = vmul.f32 %v953, %v953
      %v955 = vsel %vm370, %v954, 0.0
      %956 = vadd.xlane.f32.xlu0 %v955
      %v957 = vpop.xlane.xlu0 %956
      %v958 = vmul.f32 %v957, %v380
      %v959 = vadd.f32 %v958, 1e-12
      %v960 = vrsqrt.pop %v959
      %v961 = vmul.f32 %v960, %v959
      %v962 = vmul.f32 %v961, %v960
      %v963 = vmul.f32 0.5, %v962
      %v964 = vsub.f32 1.5, %v963
      %v965 = vmul.f32 %v960, %v964
      %vm966 = vweird.f32 %v959
      %vm967 = vweird.f32 %v960
      %vm968 = vmor %vm966, %vm967
      %v969 = vsel %vm968, %v960, %v965
      %v970 = vmul.f32 %v953, %v969
      %v971 = vperm.slane %v947, 0
      %v972 = vmul.f32 %v970, %v971
      %v973 = vperm.slane %v948, 0
      %v974 = vadd.f32 %v972, %v973
      %v975 = vld [vmem:[%s6] sm:$0xff]
      %v976 = vld [vmem:[%s6 + $0x8] sm:$0xff]
      %v977 = vld [vmem:[%s6 + $0x10] sm:$0xff]
      %v978 = vld [vmem:[%s6 + $0x18] sm:$0xff]
      %v979 = vld [vmem:[%s2 + $0x7] sm:$0x1]
      %v980 = vperm.slane %v979, 0
      %v982 = vsel %vm370, %v974, 0
      %984 = vmatpush.msra.mxu0 0.0
      %985 = vmatpush.msra.mxu0 0.0
      %986 = vmatpush.msra.mxu0 0.0
      %987 = vmatpush.msra.mxu0 0.0
      %988 = vmatpush.msra.mxu0 0.0
      %989 = vmatpush.msra.mxu0 0.0
      %990 = vmatpush.msra.mxu0 0.0
      %991 = vmatpush.msra.mxu0 0.0
      %992 = vmatpush.msra.mxu0 0.0
      %993 = vmatpush.msra.mxu0 0.0
      %994 = vmatpush.msra.mxu0 0.0
      %995 = vmatpush.msra.mxu0 0.0
      %996 = vmatpush.msra.mxu0 %v978
      %997 = vmatpush.msra.mxu0 %v977
      %998 = vmatpush.msra.mxu0 %v976
      %999 = vmatpush.msra.mxu0 %v975
      %1000 = vmatmul.f32.gmra.mxu0 %v982
      %v1001 = vpop.f32.mrf.mxu0
      %v1002 = vadd.f32 %v980, %v1001
      %1003 = vdwg.mxu0
      %v1004 = vmul.f32 %v1002, %v1002
      %v1005 = vmul.f32 %v1002, %v1004
      %v1006 = vmul.f32 %v1005, 0.044715
      %v1007 = vadd.f32 %v1002, %v1006
      %v1008 = vmul.f32 %v1007, 0.7978846
      %v1009 = vtanh.pop %v1008
      %v1010 = vadd.f32 %v1009, 1.0
      %v1011 = vmul.f32 %v1010, 0.5
      %v1012 = vmul.f32 %v1002, %v1011
      %v1013 = vld [vmem:[%s7] sm:$0xff]
      %v1014 = vld [vmem:[%s7 + $0x8] sm:$0xff]
      %v1015 = vld [vmem:[%s7 + $0x10] sm:$0xff]
      %v1016 = vld [vmem:[%s7 + $0x18] sm:$0xff]
      %v1017 = vld [vmem:[%s7 + $0x20] sm:$0xff]
      %v1018 = vld [vmem:[%s7 + $0x28] sm:$0xff]
      %v1019 = vld [vmem:[%s7 + $0x30] sm:$0xff]
      %v1020 = vld [vmem:[%s7 + $0x38] sm:$0xff]
      %v1021 = vld [vmem:[%s2 + $0x8] sm:$0x1]
      %v1022 = vperm.slane %v1021, 0
      %vm1023 = vcmask 523264
      %v1025 = vsel %vm1023, %v1012, 0
      %1027 = vmatpush.msra.mxu0 0.0
      %1028 = vmatpush.msra.mxu0 0.0
      %1029 = vmatpush.msra.mxu0 0.0
      %1030 = vmatpush.msra.mxu0 0.0
      %1031 = vmatpush.msra.mxu0 0.0
      %1032 = vmatpush.msra.mxu0 0.0
      %1033 = vmatpush.msra.mxu0 0.0
      %1034 = vmatpush.msra.mxu0 0.0
      %1035 = vmatpush.msra.mxu0 %v1020
      %1036 = vmatpush.msra.mxu0 %v1019
      %1037 = vmatpush.msra.mxu0 %v1018
      %1038 = vmatpush.msra.mxu0 %v1017
      %1039 = vmatpush.msra.mxu0 %v1016
      %1040 = vmatpush.msra.mxu0 %v1015
      %1041 = vmatpush.msra.mxu0 %v1014
      %1042 = vmatpush.msra.mxu0 %v1013
      %1043 = vmatmul.f32.gmra.mxu0 %v1025
      %v1044 = vpop.f32.mrf.mxu0
      %v1045 = vadd.f32 %v1022, %v1044
      %1046 = vdwg.mxu0
      %v1047 = vadd.f32 %v974, %v1045
      %v1048 = vld [vmem:[%s2 + $0x9] sm:$0x1]
      %v1049 = vld [vmem:[%s2 + $0xa] sm:$0x1]
      %v1050 = vsel %vm370, %v1047, 0.0
      %1051 = vadd.xlane.f32.xlu0 %v1050
      %v1052 = vpop.xlane.xlu0 %1051
      %v1053 = vmul.f32 %v1052, %v380
      %v1054 = vsub.f32 %v1047, %v1053
      %v1055 = vmul.f32 %v1054, %v1054
      %v1056 = vsel %vm370, %v1055, 0.0
      %1057 = vadd.xlane.f32.xlu0 %v1056
      %v1058 = vpop.xlane.xlu0 %1057
      %v1059 = vmul.f32 %v1058, %v380
      %v1060 = vadd.f32 %v1059, 1e-12
      %v1061 = vrsqrt.pop %v1060
      %v1062 = vmul.f32 %v1061, %v1060
      %v1063 = vmul.f32 %v1062, %v1061
      %v1064 = vmul.f32 0.5, %v1063
      %v1065 = vsub.f32 1.5, %v1064
      %v1066 = vmul.f32 %v1061, %v1065
      %vm1067 = vweird.f32 %v1060
      %vm1068 = vweird.f32 %v1061
      %vm1069 = vmor %vm1067, %vm1068
      %v1070 = vsel %vm1069, %v1061, %v1066
      %v1071 = vmul.f32 %v1054, %v1070
      %v1072 = vperm.slane %v1048, 0
      %v1073 = vmul.f32 %v1071, %v1072
      %v1074 = vperm.slane %v1049, 0
      %v1075 = vadd.f32 %v1073, %v1074
      %s1076 = scalar_lea.vmem %s3, 128
      %v1077 = vld [vmem:[%s1076] sm:$0xff]
      %v1078 = vld [vmem:[%s1076 + $0x8] sm:$0xff]
      %v1079 = vld [vmem:[%s1076 + $0x10] sm:$0xff]
      %v1080 = vld [vmem:[%s1076 + $0x18] sm:$0xff]
      %v1081 = vld [vmem:[%s1076 + $0x20] sm:$0xff]
      %v1082 = vld [vmem:[%s1076 + $0x28] sm:$0xff]
      %v1083 = vld [vmem:[%s1076 + $0x30] sm:$0xff]
      %v1084 = vld [vmem:[%s1076 + $0x38] sm:$0xff]
      %v1085 = vld [vmem:[%s1076 + $0x40] sm:$0xff]
      %v1086 = vld [vmem:[%s1076 + $0x48] sm:$0xff]
      %v1087 = vld [vmem:[%s1076 + $0x50] sm:$0xff]
      %v1088 = vld [vmem:[%s1076 + $0x58] sm:$0xff]
      %v1089 = vld [vmem:[%s1076 + $0x60] sm:$0xff]
      %v1090 = vld [vmem:[%s1076 + $0x68] sm:$0xff]
      %v1091 = vld [vmem:[%s1076 + $0x70] sm:$0xff]
      %v1092 = vld [vmem:[%s1076 + $0x78] sm:$0xff]
      %s1093 = scalar_lea.vmem %s4, 4
      %v1094 = vld [vmem:[%s1093] sm:$0x1]
      %v1095 = vld [vmem:[%s1093 + $0x1] sm:$0x1]
      %v1096 = vld [vmem:[%s1093 + $0x2] sm:$0x1]
      %v1097 = vld [vmem:[%s1093 + $0x3] sm:$0x1]
      %v1102 = vperm.slane %v1094, 0
      %v1103 = vperm.slane %v1095, 0
      %v1104 = vperm.slane %v1096, 0
      %v1105 = vperm.slane %v1097, 0
      %v1111 = vsel %vm370, %v1075, 0
      %1113 = vmatpush.msra.mxu0 0.0
      %1114 = vmatpush.msra.mxu0 0.0
      %1115 = vmatpush.msra.mxu0 0.0
      %1116 = vmatpush.msra.mxu0 0.0
      %1117 = vmatpush.msra.mxu0 0.0
      %1118 = vmatpush.msra.mxu0 0.0
      %1119 = vmatpush.msra.mxu0 0.0
      %1120 = vmatpush.msra.mxu0 0.0
      %1121 = vmatpush.msra.mxu0 0.0
      %1122 = vmatpush.msra.mxu0 0.0
      %1123 = vmatpush.msra.mxu0 0.0
      %1124 = vmatpush.msra.mxu0 0.0
      %1125 = vmatpush.msra.mxu0 %v1080
      %1126 = vmatpush.msra.mxu0 %v1079
      %1127 = vmatpush.msra.mxu0 %v1078
      %1128 = vmatpush.msra.mxu0 %v1077
      %1129 = vmatmul.f32.gmra.mxu0 %v1111
      %v1130 = vpop.f32.mrf.mxu0
      %v1131 = vadd.f32 %v1102, %v1130
      %1132 = vdwg.mxu0
      %1133 = vmatpush.msra.mxu0 0.0
      %1134 = vmatpush.msra.mxu0 0.0
      %1135 = vmatpush.msra.mxu0 0.0
      %1136 = vmatpush.msra.mxu0 0.0
      %1137 = vmatpush.msra.mxu0 0.0
      %1138 = vmatpush.msra.mxu0 0.0
      %1139 = vmatpush.msra.mxu0 0.0
      %1140 = vmatpush.msra.mxu0 0.0
      %1141 = vmatpush.msra.mxu0 0.0
      %1142 = vmatpush.msra.mxu0 0.0
      %1143 = vmatpush.msra.mxu0 0.0
      %1144 = vmatpush.msra.mxu0 0.0
      %1145 = vmatpush.msra.mxu0 %v1084
      %1146 = vmatpush.msra.mxu0 %v1083
      %1147 = vmatpush.msra.mxu0 %v1082
      %1148 = vmatpush.msra.mxu0 %v1081
      %1149 = vmatmul.f32.gmra.mxu0 %v1111
      %v1150 = vpop.f32.mrf.mxu0
      %v1151 = vadd.f32 %v1103, %v1150
      %1152 = vdwg.mxu0
      %1153 = vmatpush.msra.mxu0 0.0
      %1154 = vmatpush.msra.mxu0 0.0
      %1155 = vmatpush.msra.mxu0 0.0
      %1156 = vmatpush.msra.mxu0 0.0
      %1157 = vmatpush.msra.mxu0 0.0
      %1158 = vmatpush.msra.mxu0 0.0
      %1159 = vmatpush.msra.mxu0 0.0
      %1160 = vmatpush.msra.mxu0 0.0
      %1161 = vmatpush.msra.mxu0 0.0
      %1162 = vmatpush.msra.mxu0 0.0
      %1163 = vmatpush.msra.mxu0 0.0
      %1164 = vmatpush.msra.mxu0 0.0
      %1165 = vmatpush.msra.mxu0 %v1088
      %1166 = vmatpush.msra.mxu0 %v1087
      %1167 = vmatpush.msra.mxu0 %v1086
      %1168 = vmatpush.msra.mxu0 %v1085
      %1169 = vmatmul.f32.gmra.mxu0 %v1111
      %v1170 = vpop.f32.mrf.mxu0
      %v1171 = vadd.f32 %v1104, %v1170
      %1172 = vdwg.mxu0
      %1173 = vmatpush.msra.mxu0 0.0
      %1174 = vmatpush.msra.mxu0 0.0
      %1175 = vmatpush.msra.mxu0 0.0
      %1176 = vmatpush.msra.mxu0 0.0
      %1177 = vmatpush.msra.mxu0 0.0
      %1178 = vmatpush.msra.mxu0 0.0
      %1179 = vmatpush.msra.mxu0 0.0
      %1180 = vmatpush.msra.mxu0 0.0
      %1181 = vmatpush.msra.mxu0 0.0
      %1182 = vmatpush.msra.mxu0 0.0
      %1183 = vmatpush.msra.mxu0 0.0
      %1184 = vmatpush.msra.mxu0 0.0
      %1185 = vmatpush.msra.mxu0 %v1092
      %1186 = vmatpush.msra.mxu0 %v1091
      %1187 = vmatpush.msra.mxu0 %v1090
      %1188 = vmatpush.msra.mxu0 %v1089
      %1189 = vmatmul.f32.gmra.mxu0 %v1111
      %v1190 = vpop.f32.mrf.mxu0
      %v1191 = vadd.f32 %v1105, %v1190
      %1192 = vdwg.mxu0
      %v1193 = vmul.f32 %v1131, 0.35355338
      %v1194 = vmul.f32 %v1151, 0.35355338
      %v1195 = vmul.f32 %v1171, 0.35355338
      %v1196 = vmul.f32 %v1191, 0.35355338
      %1198 = vrot.lane.b32.xlu0 %v1131, 120
      %v1199 = vpop.permute.xlu0 %1198
      %v1201 = vsel %vm530, %v1193, 0
      %v1203 = vsel %vm530, %v1199, 0
      %1205 = vmatpush.xpose.msra.mxu0 0.0
      %1206 = vmatpush.xpose.msra.mxu0 0.0
      %1207 = vmatpush.xpose.msra.mxu0 0.0
      %1208 = vmatpush.xpose.msra.mxu0 0.0
      %1209 = vmatpush.xpose.msra.mxu0 0.0
      %1210 = vmatpush.xpose.msra.mxu0 0.0
      %1211 = vmatpush.xpose.msra.mxu0 0.0
      %1212 = vmatpush.xpose.msra.mxu0 0.0
      %1213 = vmatpush.xpose.msra.mxu0 0.0
      %1214 = vmatpush.xpose.msra.mxu0 0.0
      %1215 = vmatpush.xpose.msra.mxu0 0.0
      %1216 = vmatpush.xpose.msra.mxu0 0.0
      %1217 = vmatpush.xpose.msra.mxu0 0.0
      %1218 = vmatpush.xpose.msra.mxu0 0.0
      %1219 = vmatpush.xpose.msra.mxu0 0.0
      %1220 = vmatpush.xpose.msra.mxu0 %v1203
      %1221 = vmatmul.f32.gmra.mxu0 %v1201
      %v1222 = vpop.f32.mrf.mxu0
      %v1223 = vadd.f32 %v525, %v1222
      %1224 = vdwg.mxu0
      %1226 = vrot.lane.b32.xlu0 %v1151, 120
      %v1227 = vpop.permute.xlu0 %1226
      %v1229 = vsel %vm530, %v1194, 0
      %v1231 = vsel %vm530, %v1227, 0
      %1233 = vmatpush.xpose.msra.mxu0 0.0
      %1234 = vmatpush.xpose.msra.mxu0 0.0
      %1235 = vmatpush.xpose.msra.mxu0 0.0
      %1236 = vmatpush.xpose.msra.mxu0 0.0
      %1237 = vmatpush.xpose.msra.mxu0 0.0
      %1238 = vmatpush.xpose.msra.mxu0 0.0
      %1239 = vmatpush.xpose.msra.mxu0 0.0
      %1240 = vmatpush.xpose.msra.mxu0 0.0
      %1241 = vmatpush.xpose.msra.mxu0 0.0
      %1242 = vmatpush.xpose.msra.mxu0 0.0
      %1243 = vmatpush.xpose.msra.mxu0 0.0
      %1244 = vmatpush.xpose.msra.mxu0 0.0
      %1245 = vmatpush.xpose.msra.mxu0 0.0
      %1246 = vmatpush.xpose.msra.mxu0 0.0
      %1247 = vmatpush.xpose.msra.mxu0 0.0
      %1248 = vmatpush.xpose.msra.mxu0 %v1231
      %1249 = vmatmul.f32.gmra.mxu0 %v1229
      %v1250 = vpop.f32.mrf.mxu0
      %v1251 = vadd.f32 %v525, %v1250
      %1252 = vdwg.mxu0
      %1254 = vrot.lane.b32.xlu0 %v1171, 120
      %v1255 = vpop.permute.xlu0 %1254
      %v1257 = vsel %vm530, %v1195, 0
      %v1259 = vsel %vm530, %v1255, 0
      %1261 = vmatpush.xpose.msra.mxu0 0.0
      %1262 = vmatpush.xpose.msra.mxu0 0.0
      %1263 = vmatpush.xpose.msra.mxu0 0.0
      %1264 = vmatpush.xpose.msra.mxu0 0.0
      %1265 = vmatpush.xpose.msra.mxu0 0.0
      %1266 = vmatpush.xpose.msra.mxu0 0.0
      %1267 = vmatpush.xpose.msra.mxu0 0.0
      %1268 = vmatpush.xpose.msra.mxu0 0.0
      %1269 = vmatpush.xpose.msra.mxu0 0.0
      %1270 = vmatpush.xpose.msra.mxu0 0.0
      %1271 = vmatpush.xpose.msra.mxu0 0.0
      %1272 = vmatpush.xpose.msra.mxu0 0.0
      %1273 = vmatpush.xpose.msra.mxu0 0.0
      %1274 = vmatpush.xpose.msra.mxu0 0.0
      %1275 = vmatpush.xpose.msra.mxu0 0.0
      %1276 = vmatpush.xpose.msra.mxu0 %v1259
      %1277 = vmatmul.f32.gmra.mxu0 %v1257
      %v1278 = vpop.f32.mrf.mxu0
      %v1279 = vadd.f32 %v525, %v1278
      %1280 = vdwg.mxu0
      %1282 = vrot.lane.b32.xlu0 %v1191, 120
      %v1283 = vpop.permute.xlu0 %1282
      %v1285 = vsel %vm530, %v1196, 0
      %v1287 = vsel %vm530, %v1283, 0
      %1289 = vmatpush.xpose.msra.mxu0 0.0
      %1290 = vmatpush.xpose.msra.mxu0 0.0
      %1291 = vmatpush.xpose.msra.mxu0 0.0
      %1292 = vmatpush.xpose.msra.mxu0 0.0
      %1293 = vmatpush.xpose.msra.mxu0 0.0
      %1294 = vmatpush.xpose.msra.mxu0 0.0
      %1295 = vmatpush.xpose.msra.mxu0 0.0
      %1296 = vmatpush.xpose.msra.mxu0 0.0
      %1297 = vmatpush.xpose.msra.mxu0 0.0
      %1298 = vmatpush.xpose.msra.mxu0 0.0
      %1299 = vmatpush.xpose.msra.mxu0 0.0
      %1300 = vmatpush.xpose.msra.mxu0 0.0
      %1301 = vmatpush.xpose.msra.mxu0 0.0
      %1302 = vmatpush.xpose.msra.mxu0 0.0
      %1303 = vmatpush.xpose.msra.mxu0 0.0
      %1304 = vmatpush.xpose.msra.mxu0 %v1287
      %1305 = vmatmul.f32.gmra.mxu0 %v1285
      %v1306 = vpop.f32.mrf.mxu0
      %v1307 = vadd.f32 %v525, %v1306
      %1308 = vdwg.mxu0
      %v1309 = vsel %vm530, %v1223, -inf
      %1310 = vmax.xlane.f32.xlu0 %v1309
      %v1311 = vpop.xlane.xlu0 %1310
      %v1312 = vsel %vm530, %v1251, -inf
      %1313 = vmax.xlane.f32.xlu0 %v1312
      %v1314 = vpop.xlane.xlu0 %1313
      %v1315 = vsel %vm530, %v1279, -inf
      %1316 = vmax.xlane.f32.xlu0 %v1315
      %v1317 = vpop.xlane.xlu0 %1316
      %v1318 = vsel %vm530, %v1307, -inf
      %1319 = vmax.xlane.f32.xlu0 %v1318
      %v1320 = vpop.xlane.xlu0 %1319
      %v1321 = vsub.f32 %v1223, %v1311
      %v1322 = vsub.f32 %v1251, %v1314
      %v1323 = vsub.f32 %v1279, %v1317
      %v1324 = vsub.f32 %v1307, %v1320
      %v1325 = vmul.f32 %v1321, 1.442695
      %v1326 = vpow.pop %v1325
      %v1327 = vmul.f32 %v1322, 1.442695
      %v1328 = vpow.pop %v1327
      %v1329 = vmul.f32 %v1323, 1.442695
      %v1330 = vpow.pop %v1329
      %v1331 = vmul.f32 %v1324, 1.442695
      %v1332 = vpow.pop %v1331
      %v1333 = vsel %vm530, %v1326, 0.0
      %1334 = vadd.xlane.f32.xlu0 %v1333
      %v1335 = vpop.xlane.xlu0 %1334
      %v1336 = vsel %vm530, %v1328, 0.0
      %1337 = vadd.xlane.f32.xlu0 %v1336
      %v1338 = vpop.xlane.xlu0 %1337
      %v1339 = vsel %vm530, %v1330, 0.0
      %1340 = vadd.xlane.f32.xlu0 %v1339
      %v1341 = vpop.xlane.xlu0 %1340
      %v1342 = vsel %vm530, %v1332, 0.0
      %1343 = vadd.xlane.f32.xlu0 %v1342
      %v1344 = vpop.xlane.xlu0 %1343
      %v1345 = vrcp.pop %v1335
      %v1346 = vmul.f32 %v1335, %v1345
      %v1347 = vsub.f32 1.0, %v1346
      %v1348 = vmul.f32 %v1345, %v1347
      %v1349 = vadd.f32 %v1345, %v1348
      %vm1350 = vweird.f32 %v1335
      %vm1351 = vweird.f32 %v1345
      %vm1352 = vmor %vm1350, %vm1351
      %v1353 = vsel %vm1352, %v1345, %v1349
      %v1354 = vand.u32 2147483647, %v1335
      %vm1355 = vcmp.eq.f32.partialorder %v1354, 8.507059e+37
      %v1356 = vand.u32 %v1335, 2147483648
      %v1357 = vor.u32 1.1754944e-38, %v1356
      %v1358 = vsel %vm1355, %v1357, %v1353
      %v1359 = vmul.f32 %v1326, %v1358
      %v1360 = vrcp.pop %v1338
      %v1361 = vmul.f32 %v1338, %v1360
      %v1362 = vsub.f32 1.0, %v1361
      %v1363 = vmul.f32 %v1360, %v1362
      %v1364 = vadd.f32 %v1360, %v1363
      %vm1365 = vweird.f32 %v1338
      %vm1366 = vweird.f32 %v1360
      %vm1367 = vmor %vm1365, %vm1366
      %v1368 = vsel %vm1367, %v1360, %v1364
      %v1369 = vand.u32 2147483647, %v1338
      %vm1370 = vcmp.eq.f32.partialorder %v1369, 8.507059e+37
      %v1371 = vand.u32 %v1338, 2147483648
      %v1372 = vor.u32 1.1754944e-38, %v1371
      %v1373 = vsel %vm1370, %v1372, %v1368
      %v1374 = vmul.f32 %v1328, %v1373
      %v1375 = vrcp.pop %v1341
      %v1376 = vmul.f32 %v1341, %v1375
      %v1377 = vsub.f32 1.0, %v1376
      %v1378 = vmul.f32 %v1375, %v1377
      %v1379 = vadd.f32 %v1375, %v1378
      %vm1380 = vweird.f32 %v1341
      %vm1381 = vweird.f32 %v1375
      %vm1382 = vmor %vm1380, %vm1381
      %v1383 = vsel %vm1382, %v1375, %v1379
      %v1384 = vand.u32 2147483647, %v1341
      %vm1385 = vcmp.eq.f32.partialorder %v1384, 8.507059e+37
      %v1386 = vand.u32 %v1341, 2147483648
      %v1387 = vor.u32 1.1754944e-38, %v1386
      %v1388 = vsel %vm1385, %v1387, %v1383
      %v1389 = vmul.f32 %v1330, %v1388
      %v1390 = vrcp.pop %v1344
      %v1391 = vmul.f32 %v1344, %v1390
      %v1392 = vsub.f32 1.0, %v1391
      %v1393 = vmul.f32 %v1390, %v1392
      %v1394 = vadd.f32 %v1390, %v1393
      %vm1395 = vweird.f32 %v1344
      %vm1396 = vweird.f32 %v1390
      %vm1397 = vmor %vm1395, %vm1396
      %v1398 = vsel %vm1397, %v1390, %v1394
      %v1399 = vand.u32 2147483647, %v1344
      %vm1400 = vcmp.eq.f32.partialorder %v1399, 8.507059e+37
      %v1401 = vand.u32 %v1344, 2147483648
      %v1402 = vor.u32 1.1754944e-38, %v1401
      %v1403 = vsel %vm1400, %v1402, %v1398
      %v1404 = vmul.f32 %v1332, %v1403
      %1405 = vrot.lane.b32.xlu0 %v1131, 112
      %v1406 = vpop.permute.xlu0 %1405
      %v1409 = vsel %vm530, %v1359, 0
      %1411 = vmatpush.msra.mxu0 0.0
      %1412 = vmatpush.msra.mxu0 0.0
      %1413 = vmatpush.msra.mxu0 0.0
      %1414 = vmatpush.msra.mxu0 0.0
      %1415 = vmatpush.msra.mxu0 0.0
      %1416 = vmatpush.msra.mxu0 0.0
      %1417 = vmatpush.msra.mxu0 0.0
      %1418 = vmatpush.msra.mxu0 0.0
      %1419 = vmatpush.msra.mxu0 0.0
      %1420 = vmatpush.msra.mxu0 0.0
      %1421 = vmatpush.msra.mxu0 0.0
      %1422 = vmatpush.msra.mxu0 0.0
      %1423 = vmatpush.msra.mxu0 0.0
      %1424 = vmatpush.msra.mxu0 0.0
      %1425 = vmatpush.msra.mxu0 0.0
      %1426 = vmatpush.msra.mxu0 %v1406
      %1427 = vmatmul.f32.gmra.mxu0 %v1409
      %v1428 = vpop.f32.mrf.mxu0
      %v1429 = vadd.f32 0.0, %v1428
      %1430 = vdwg.mxu0
      %1431 = vrot.lane.b32.xlu0 %v1151, 112
      %v1432 = vpop.permute.xlu0 %1431
      %v1435 = vsel %vm530, %v1374, 0
      %1437 = vmatpush.msra.mxu0 0.0
      %1438 = vmatpush.msra.mxu0 0.0
      %1439 = vmatpush.msra.mxu0 0.0
      %1440 = vmatpush.msra.mxu0 0.0
      %1441 = vmatpush.msra.mxu0 0.0
      %1442 = vmatpush.msra.mxu0 0.0
      %1443 = vmatpush.msra.mxu0 0.0
      %1444 = vmatpush.msra.mxu0 0.0
      %1445 = vmatpush.msra.mxu0 0.0
      %1446 = vmatpush.msra.mxu0 0.0
      %1447 = vmatpush.msra.mxu0 0.0
      %1448 = vmatpush.msra.mxu0 0.0
      %1449 = vmatpush.msra.mxu0 0.0
      %1450 = vmatpush.msra.mxu0 0.0
      %1451 = vmatpush.msra.mxu0 0.0
      %1452 = vmatpush.msra.mxu0 %v1432
      %1453 = vmatmul.f32.gmra.mxu0 %v1435
      %v1454 = vpop.f32.mrf.mxu0
      %v1455 = vadd.f32 0.0, %v1454
      %1456 = vdwg.mxu0
      %1457 = vrot.lane.b32.xlu0 %v1171, 112
      %v1458 = vpop.permute.xlu0 %1457
      %v1461 = vsel %vm530, %v1389, 0
      %1463 = vmatpush.msra.mxu0 0.0
      %1464 = vmatpush.msra.mxu0 0.0
      %1465 = vmatpush.msra.mxu0 0.0
      %1466 = vmatpush.msra.mxu0 0.0
      %1467 = vmatpush.msra.mxu0 0.0
      %1468 = vmatpush.msra.mxu0 0.0
      %1469 = vmatpush.msra.mxu0 0.0
      %1470 = vmatpush.msra.mxu0 0.0
      %1471 = vmatpush.msra.mxu0 0.0
      %1472 = vmatpush.msra.mxu0 0.0
      %1473 = vmatpush.msra.mxu0 0.0
      %1474 = vmatpush.msra.mxu0 0.0
      %1475 = vmatpush.msra.mxu0 0.0
      %1476 = vmatpush.msra.mxu0 0.0
      %1477 = vmatpush.msra.mxu0 0.0
      %1478 = vmatpush.msra.mxu0 %v1458
      %1479 = vmatmul.f32.gmra.mxu0 %v1461
      %v1480 = vpop.f32.mrf.mxu0
      %v1481 = vadd.f32 0.0, %v1480
      %1482 = vdwg.mxu0
      %1483 = vrot.lane.b32.xlu0 %v1191, 112
      %v1484 = vpop.permute.xlu0 %1483
      %v1487 = vsel %vm530, %v1404, 0
      %1489 = vmatpush.msra.mxu0 0.0
      %1490 = vmatpush.msra.mxu0 0.0
      %1491 = vmatpush.msra.mxu0 0.0
      %1492 = vmatpush.msra.mxu0 0.0
      %1493 = vmatpush.msra.mxu0 0.0
      %1494 = vmatpush.msra.mxu0 0.0
      %1495 = vmatpush.msra.mxu0 0.0
      %1496 = vmatpush.msra.mxu0 0.0
      %1497 = vmatpush.msra.mxu0 0.0
      %1498 = vmatpush.msra.mxu0 0.0
      %1499 = vmatpush.msra.mxu0 0.0
      %1500 = vmatpush.msra.mxu0 0.0
      %1501 = vmatpush.msra.mxu0 0.0
      %1502 = vmatpush.msra.mxu0 0.0
      %1503 = vmatpush.msra.mxu0 0.0
      %1504 = vmatpush.msra.mxu0 %v1484
      %1505 = vmatmul.f32.gmra.mxu0 %v1487
      %v1506 = vpop.f32.mrf.mxu0
      %v1507 = vadd.f32 0.0, %v1506
      %1508 = vdwg.mxu0
      %s1509 = scalar_lea.vmem %s5, 32
      %v1510 = vld [vmem:[%s1509] sm:$0xff]
      %v1511 = vld [vmem:[%s1509 + $0x8] sm:$0xff]
      %v1512 = vld [vmem:[%s1509 + $0x10] sm:$0xff]
      %v1513 = vld [vmem:[%s1509 + $0x18] sm:$0xff]
      %v1515 = vsel %vm530, %v1429, 0
      %1517 = vmatpush.msra.mxu0 0.0
      %1518 = vmatpush.msra.mxu0 0.0
      %1519 = vmatpush.msra.mxu0 0.0
      %1520 = vmatpush.msra.mxu0 0.0
      %1521 = vmatpush.msra.mxu0 0.0
      %1522 = vmatpush.msra.mxu0 0.0
      %1523 = vmatpush.msra.mxu0 0.0
      %1524 = vmatpush.msra.mxu0 0.0
      %1525 = vmatpush.msra.mxu0 0.0
      %1526 = vmatpush.msra.mxu0 0.0
      %1527 = vmatpush.msra.mxu0 0.0
      %1528 = vmatpush.msra.mxu0 0.0
      %1529 = vmatpush.msra.mxu0 0.0
      %1530 = vmatpush.msra.mxu0 0.0
      %1531 = vmatpush.msra.mxu0 0.0
      %1532 = vmatpush.msra.mxu0 %v1510
      %1533 = vmatmul.f32.gmra.mxu0 %v1515
      %v1534 = vpop.f32.mrf.mxu0
      %v1535 = vadd.f32 0.0, %v1534
      %1536 = vdwg.mxu0
      %v1538 = vsel %vm530, %v1455, 0
      %1540 = vmatpush.msra.mxu0 0.0
      %1541 = vmatpush.msra.mxu0 0.0
      %1542 = vmatpush.msra.mxu0 0.0
      %1543 = vmatpush.msra.mxu0 0.0
      %1544 = vmatpush.msra.mxu0 0.0
      %1545 = vmatpush.msra.mxu0 0.0
      %1546 = vmatpush.msra.mxu0 0.0
      %1547 = vmatpush.msra.mxu0 0.0
      %1548 = vmatpush.msra.mxu0 0.0
      %1549 = vmatpush.msra.mxu0 0.0
      %1550 = vmatpush.msra.mxu0 0.0
      %1551 = vmatpush.msra.mxu0 0.0
      %1552 = vmatpush.msra.mxu0 0.0
      %1553 = vmatpush.msra.mxu0 0.0
      %1554 = vmatpush.msra.mxu0 0.0
      %1555 = vmatpush.msra.mxu0 %v1511
      %1556 = vmatmul.f32.gmra.mxu0 %v1538
      %v1557 = vpop.f32.mrf.mxu0
      %v1558 = vadd.f32 0.0, %v1557
      %1559 = vdwg.mxu0
      %v1561 = vsel %vm530, %v1481, 0
      %1563 = vmatpush.msra.mxu0 0.0
      %1564 = vmatpush.msra.mxu0 0.0
      %1565 = vmatpush.msra.mxu0 0.0
      %1566 = vmatpush.msra.mxu0 0.0
      %1567 = vmatpush.msra.mxu0 0.0
      %1568 = vmatpush.msra.mxu0 0.0
      %1569 = vmatpush.msra.mxu0 0.0
      %1570 = vmatpush.msra.mxu0 0.0
      %1571 = vmatpush.msra.mxu0 0.0
      %1572 = vmatpush.msra.mxu0 0.0
      %1573 = vmatpush.msra.mxu0 0.0
      %1574 = vmatpush.msra.mxu0 0.0
      %1575 = vmatpush.msra.mxu0 0.0
      %1576 = vmatpush.msra.mxu0 0.0
      %1577 = vmatpush.msra.mxu0 0.0
      %1578 = vmatpush.msra.mxu0 %v1512
      %1579 = vmatmul.f32.gmra.mxu0 %v1561
      %v1580 = vpop.f32.mrf.mxu0
      %v1581 = vadd.f32 0.0, %v1580
      %1582 = vdwg.mxu0
      %v1584 = vsel %vm530, %v1507, 0
      %1586 = vmatpush.msra.mxu0 0.0
      %1587 = vmatpush.msra.mxu0 0.0
      %1588 = vmatpush.msra.mxu0 0.0
      %1589 = vmatpush.msra.mxu0 0.0
      %1590 = vmatpush.msra.mxu0 0.0
      %1591 = vmatpush.msra.mxu0 0.0
      %1592 = vmatpush.msra.mxu0 0.0
      %1593 = vmatpush.msra.mxu0 0.0
      %1594 = vmatpush.msra.mxu0 0.0
      %1595 = vmatpush.msra.mxu0 0.0
      %1596 = vmatpush.msra.mxu0 0.0
      %1597 = vmatpush.msra.mxu0 0.0
      %1598 = vmatpush.msra.mxu0 0.0
      %1599 = vmatpush.msra.mxu0 0.0
      %1600 = vmatpush.msra.mxu0 0.0
      %1601 = vmatpush.msra.mxu0 %v1513
      %1602 = vmatmul.f32.gmra.mxu0 %v1584
      %v1603 = vpop.f32.mrf.mxu0
      %v1604 = vadd.f32 0.0, %v1603
      %1605 = vdwg.mxu0
      %v1606 = vsel %vm370, %v1535, 0.0
      %v1607 = vsel %vm370, %v1558, 0.0
      %v1608 = vadd.f32 %v1606, %v1607
      %v1609 = vsel %vm370, %v1581, 0.0
      %v1610 = vadd.f32 %v1608, %v1609
      %v1611 = vsel %vm370, %v1604, 0.0
      %v1612 = vadd.f32 %v1610, %v1611
      %v1613 = vld [vmem:[%s2 + $0xb] sm:$0x1]
      %v1614 = vperm.slane %v1613, 0
      %v1615 = vadd.f32 %v1612, %v1614
      %v1616 = vadd.f32 %v1075, %v1615
      %v1617 = vld [vmem:[%s2 + $0xc] sm:$0x1]
      %v1618 = vld [vmem:[%s2 + $0xd] sm:$0x1]
      %v1619 = vsel %vm370, %v1616, 0.0
      %1620 = vadd.xlane.f32.xlu0 %v1619
      %v1621 = vpop.xlane.xlu0 %1620
      %v1622 = vmul.f32 %v1621, %v380
      %v1623 = vsub.f32 %v1616, %v1622
      %v1624 = vmul.f32 %v1623, %v1623
      %v1625 = vsel %vm370, %v1624, 0.0
      %1626 = vadd.xlane.f32.xlu0 %v1625
      %v1627 = vpop.xlane.xlu0 %1626
      %v1628 = vmul.f32 %v1627, %v380
      %v1629 = vadd.f32 %v1628, 1e-12
      %v1630 = vrsqrt.pop %v1629
      %v1631 = vmul.f32 %v1630, %v1629
      %v1632 = vmul.f32 %v1631, %v1630
      %v1633 = vmul.f32 0.5, %v1632
      %v1634 = vsub.f32 1.5, %v1633
      %v1635 = vmul.f32 %v1630, %v1634
      %vm1636 = vweird.f32 %v1629
      %vm1637 = vweird.f32 %v1630
      %vm1638 = vmor %vm1636, %vm1637
      %v1639 = vsel %vm1638, %v1630, %v1635
      %v1640 = vmul.f32 %v1623, %v1639
      %v1641 = vperm.slane %v1617, 0
      %v1642 = vmul.f32 %v1640, %v1641
      %v1643 = vperm.slane %v1618, 0
      %v1644 = vadd.f32 %v1642, %v1643
      %s1645 = scalar_lea.vmem %s6, 32
      %v1646 = vld [vmem:[%s1645] sm:$0xff]
      %v1647 = vld [vmem:[%s1645 + $0x8] sm:$0xff]
      %v1648 = vld [vmem:[%s1645 + $0x10] sm:$0xff]
      %v1649 = vld [vmem:[%s1645 + $0x18] sm:$0xff]
      %v1650 = vld [vmem:[%s2 + $0xe] sm:$0x1]
      %v1651 = vperm.slane %v1650, 0
      %v1653 = vsel %vm370, %v1644, 0
      %1655 = vmatpush.msra.mxu0 0.0
      %1656 = vmatpush.msra.mxu0 0.0
      %1657 = vmatpush.msra.mxu0 0.0
      %1658 = vmatpush.msra.mxu0 0.0
      %1659 = vmatpush.msra.mxu0 0.0
      %1660 = vmatpush.msra.mxu0 0.0
      %1661 = vmatpush.msra.mxu0 0.0
      %1662 = vmatpush.msra.mxu0 0.0
      %1663 = vmatpush.msra.mxu0 0.0
      %1664 = vmatpush.msra.mxu0 0.0
      %1665 = vmatpush.msra.mxu0 0.0
      %1666 = vmatpush.msra.mxu0 0.0
      %1667 = vmatpush.msra.mxu0 %v1649
      %1668 = vmatpush.msra.mxu0 %v1648
      %1669 = vmatpush.msra.mxu0 %v1647
      %1670 = vmatpush.msra.mxu0 %v1646
      %1671 = vmatmul.f32.gmra.mxu0 %v1653
      %v1672 = vpop.f32.mrf.mxu0
      %v1673 = vadd.f32 %v1651, %v1672
      %1674 = vdwg.mxu0
      %v1675 = vmul.f32 %v1673, %v1673
      %v1676 = vmul.f32 %v1673, %v1675
      %v1677 = vmul.f32 %v1676, 0.044715
      %v1678 = vadd.f32 %v1673, %v1677
      %v1679 = vmul.f32 %v1678, 0.7978846
      %v1680 = vtanh.pop %v1679
      %v1681 = vadd.f32 %v1680, 1.0
      %v1682 = vmul.f32 %v1681, 0.5
      %v1683 = vmul.f32 %v1673, %v1682
      %s1684 = scalar_lea.vmem %s7, 64
      %v1685 = vld [vmem:[%s1684] sm:$0xff]
      %v1686 = vld [vmem:[%s1684 + $0x8] sm:$0xff]
      %v1687 = vld [vmem:[%s1684 + $0x10] sm:$0xff]
      %v1688 = vld [vmem:[%s1684 + $0x18] sm:$0xff]
      %v1689 = vld [vmem:[%s1684 + $0x20] sm:$0xff]
      %v1690 = vld [vmem:[%s1684 + $0x28] sm:$0xff]
      %v1691 = vld [vmem:[%s1684 + $0x30] sm:$0xff]
      %v1692 = vld [vmem:[%s1684 + $0x38] sm:$0xff]
      %v1693 = vld [vmem:[%s2 + $0xf] sm:$0x1]
      %v1694 = vperm.slane %v1693, 0
      %v1696 = vsel %vm1023, %v1683, 0
      %1698 = vmatpush.msra.mxu0 0.0
      %1699 = vmatpush.msra.mxu0 0.0
      %1700 = vmatpush.msra.mxu0 0.0
      %1701 = vmatpush.msra.mxu0 0.0
      %1702 = vmatpush.msra.mxu0 0.0
      %1703 = vmatpush.msra.mxu0 0.0
      %1704 = vmatpush.msra.mxu0 0.0
      %1705 = vmatpush.msra.mxu0 0.0
      %1706 = vmatpush.msra.mxu0 %v1692
      %1707 = vmatpush.msra.mxu0 %v1691
      %1708 = vmatpush.msra.mxu0 %v1690
      %1709 = vmatpush.msra.mxu0 %v1689
      %1710 = vmatpush.msra.mxu0 %v1688
      %1711 = vmatpush.msra.mxu0 %v1687
      %1712 = vmatpush.msra.mxu0 %v1686
      %1713 = vmatpush.msra.mxu0 %v1685
      %1714 = vmatmul.f32.gmra.mxu0 %v1696
      %v1715 = vpop.f32.mrf.mxu0
      %v1716 = vadd.f32 %v1694, %v1715
      %1717 = vdwg.mxu0
      %v1718 = vadd.f32 %v1644, %v1716
      %v1719 = vld [vmem:[%s2 + $0x10] sm:$0x1]
      %v1720 = vld [vmem:[%s2 + $0x11] sm:$0x1]
      %v1721 = vsel %vm370, %v1718, 0.0
      %1722 = vadd.xlane.f32.xlu0 %v1721
      %v1723 = vpop.xlane.xlu0 %1722
      %v1724 = vmul.f32 %v1723, %v380
      %v1725 = vsub.f32 %v1718, %v1724
      %v1726 = vmul.f32 %v1725, %v1725
      %v1727 = vsel %vm370, %v1726, 0.0
      %1728 = vadd.xlane.f32.xlu0 %v1727
      %v1729 = vpop.xlane.xlu0 %1728
      %v1730 = vmul.f32 %v1729, %v380
      %v1731 = vadd.f32 %v1730, 1e-12
      %v1732 = vrsqrt.pop %v1731
      %v1733 = vmul.f32 %v1732, %v1731
      %v1734 = vmul.f32 %v1733, %v1732
      %v1735 = vmul.f32 0.5, %v1734
      %v1736 = vsub.f32 1.5, %v1735
      %v1737 = vmul.f32 %v1732, %v1736
      %vm1738 = vweird.f32 %v1731
      %vm1739 = vweird.f32 %v1732
      %vm1740 = vmor %vm1738, %vm1739
      %v1741 = vsel %vm1740, %v1732, %v1737
      %v1742 = vmul.f32 %v1725, %v1741
      %v1743 = vperm.slane %v1719, 0
      %v1744 = vmul.f32 %v1742, %v1743
      %v1745 = vperm.slane %v1720, 0
      %v1746 = vadd.f32 %v1744, %v1745
      %v1747 = vld [vmem:[%s8] sm:$0xff]
      %v1748 = vld [vmem:[%s8 + $0x8] sm:$0xff]
      %v1749 = vld [vmem:[%s8 + $0x10] sm:$0xff]
      %v1750 = vld [vmem:[%s8 + $0x18] sm:$0xff]
      %v1751 = vld [vmem:[%s2 + $0x2] sm:$0x1]
      %v1753 = vsel %vm370, %v1746, 0
      %1755 = vmatpush.msra.mxu0 0.0
      %1756 = vmatpush.msra.mxu0 0.0
      %1757 = vmatpush.msra.mxu0 0.0
      %1758 = vmatpush.msra.mxu0 0.0
      %1759 = vmatpush.msra.mxu0 0.0
      %1760 = vmatpush.msra.mxu0 0.0
      %1761 = vmatpush.msra.mxu0 0.0
      %1762 = vmatpush.msra.mxu0 0.0
      %1763 = vmatpush.msra.mxu0 0.0
      %1764 = vmatpush.msra.mxu0 0.0
      %1765 = vmatpush.msra.mxu0 0.0
      %1766 = vmatpush.msra.mxu0 0.0
      %1767 = vmatpush.msra.mxu0 %v1750
      %1768 = vmatpush.msra.mxu0 %v1749
      %1769 = vmatpush.msra.mxu0 %v1748
      %1770 = vmatpush.msra.mxu0 %v1747
      %1771 = vmatmul.f32.gmra.mxu0 %v1753
      %v1772 = vpop.f32.mrf.mxu0
      %v1773 = vadd.f32 %v1751, %v1772
      %1774 = vdwg.mxu0
      %v1775 = vtanh.pop %v1773
      %v1776 = vld [vmem:[%s9] sm:$0xff]
      %v1777 = vld [vmem:[%s9 + $0x8] sm:$0xff]
      %v1778 = vld [vmem:[%s9 + $0x10] sm:$0xff]
      %v1779 = vld [vmem:[%s9 + $0x18] sm:$0xff]
      %v1780 = vld [vmem:[%s2 + $0x3] sm:$0x1]
      %v1782 = vsel %vm370, %v1775, 0
      %1784 = vmatpush.msra.mxu0 0.0
      %1785 = vmatpush.msra.mxu0 0.0
      %1786 = vmatpush.msra.mxu0 0.0
      %1787 = vmatpush.msra.mxu0 0.0
      %1788 = vmatpush.msra.mxu0 0.0
      %1789 = vmatpush.msra.mxu0 0.0
      %1790 = vmatpush.msra.mxu0 0.0
      %1791 = vmatpush.msra.mxu0 0.0
      %1792 = vmatpush.msra.mxu0 0.0
      %1793 = vmatpush.msra.mxu0 0.0
      %1794 = vmatpush.msra.mxu0 0.0
      %1795 = vmatpush.msra.mxu0 0.0
      %1796 = vmatpush.msra.mxu0 %v1779
      %1797 = vmatpush.msra.mxu0 %v1778
      %1798 = vmatpush.msra.mxu0 %v1777
      %1799 = vmatpush.msra.mxu0 %v1776
      %1800 = vmatmul.f32.gmra.mxu0 %v1782
      %v1801 = vpop.f32.mrf.mxu0
      %v1802 = vadd.f32 %v1780, %v1801
      %1803 = vdwg.mxu0
      %vm1804 = vcmask 1040384
      %v1805 = vsel %vm1804, %v1802, -inf
      %1806 = vmax.xlane.f32.xlu0 %v1805
      %v1807 = vpop.xlane.xlu0 %1806
      %v1808 = vsub.f32 %v1802, %v1807
      %v1809 = vmul.f32 %v1808, 1.442695
      %v1810 = vpow.pop %v1809
      %v1811 = vsel %vm1804, %v1810, 0.0
      %1812 = vadd.xlane.f32.xlu0 %v1811
      %v1813 = vpop.xlane.xlu0 %1812
      %v1814 = vrcp.pop %v1813
      %v1815 = vmul.f32 %v1813, %v1814
      %v1816 = vsub.f32 1.0, %v1815
      %v1817 = vmul.f32 %v1814, %v1816
      %v1818 = vadd.f32 %v1814, %v1817
      %vm1819 = vweird.f32 %v1813
      %vm1820 = vweird.f32 %v1814
      %vm1821 = vmor %vm1819, %vm1820
      %v1822 = vsel %vm1821, %v1814, %v1818
      %v1823 = vand.u32 2147483647, %v1813
      %vm1824 = vcmp.eq.f32.partialorder %v1823, 8.507059e+37
      %v1825 = vand.u32 %v1813, 2147483648
      %v1826 = vor.u32 1.1754944e-38, %v1825
      %v1827 = vsel %vm1824, %v1826, %v1822
      %v1828 = vmul.f32 %v1810, %v1827
      %1829 = vst [vmem:[%s366] sm:$0x1] %v1828
      %p1830 = scmp.lt.s32.totalorder %s21, 1
      %s1831 = scalar_select %p1830, %s21, 1
      %s1832 = scalar_lea.vmem %s10, %s1831
      // Predicated region
      $region61: #{predictor_predict.1} parent=59 // pred_check
        %p1833 = pneg %p259
      $region62: #{predictor_predict.1} parent=59 // pred_check_branch
        %1835 = sbr.rel (%p1833) target = $region64
      $region63: #{predictor_predict.1} parent=59 // pred_region
        _
      $region64: #{predictor_predict.1} parent=59 // pred_fallthru
        _
    $region60: #{predictor_predict.1} parent=5 // pred_fallthru
      _
    %p1836 = scmp.le.s32.totalorder 2, %s16
    // Predicated region
    $region65: #{predictor_predict.1} parent=5 // pred_check
      %p1837 = pneg %p1836
    $region66: #{predictor_predict.1} parent=5 // pred_check_branch
      %1839 = sbr.rel (%p1837) target = $region68
    $region67: #{predictor_predict.1} parent=5 // pred_region
      %s1840 = ssub.s32 %s16, 2
      // Predicated region
      $region69: #{predictor_predict.1} parent=67 // pred_check
        %p1841 = pneg %p265
      $region70: #{predictor_predict.1} parent=67 // pred_check_branch
        %1843 = sbr.rel (%p1841) target = $region72
      $region71: #{predictor_predict.1} parent=67 // pred_region
        %p1844 = scmp.lt.s32.totalorder %s22, 1
        %s1845 = scalar_select %p1844, %s22, 1
        %s1846 = scalar_lea.vmem %s10, %s1845
      $region72: #{predictor_predict.1} parent=67 // pred_fallthru
        _
    $region68: #{predictor_predict.1} parent=5 // pred_fallthru
      _
  $region6: #{predictor_predict.1} parent=0 // loop_footer
    %s20 = sadd.s32 1, %s16
  $region7: #{predictor_predict.1} parent=0 // loop_footer_branch
    %15 = sbr.rel target = $region3
  $region8: #{predictor_predict.1} parent=0 // loop_exit
    _

</llo_original>
